<compile_context>
chip_gen: v5e
topology: v5e:2x2
jax: 0.10.0
libtpu: 0.0.40
codegen_flags: <defaults>
</compile_context>

<pallas_src>
import functools

import jax
import jax.numpy as jnp
from jax.experimental import pallas as pl
from jax.experimental.pallas import tpu as pltpu

HIDDEN = 768
LANES = 128       # vreg lane width
SUBLANES = 8      # f32 sublane count
K_TILE_MAX = 2048  # max K (in_features) tile when streaming w1


def _round_up(x, m):
    return ((x + m - 1) // m) * m


def _vmem_capacity_bytes():
    """Per-generation VMEM capacity; conservative fallback if the query fails."""
    try:
        info = pltpu.get_tpu_info()
        cap = getattr(info, "vmem_capacity_bytes", None)
        if cap:
            return int(cap)
    except Exception:
        pass
    return 64 * 1024 * 1024   # smallest across v5e/v6e/v7x (v7x per-TC VMEM)


def _choose_k_tile(in_features):
    """Full K if it fits comfortably; otherwise a lane-aligned divisor tile."""
    if in_features <= K_TILE_MAX:
        return in_features
    for tk in range(K_TILE_MAX, LANES - 1, -LANES):
        if in_features % tk == 0:
            return tk
    # TODO(synk): non-divisible huge in_features needs K zero-padding (hoisted
    # into prepare_params) before the streamed-K path is safe; keep resident.
    return in_features


def _classify_layer_kernel(x_ref, w1_ref, b1_ref, w2_ref, b2_ref, o_ref, h_acc):
    k = pl.program_id(1)

    @pl.when(k == 0)
    def _():
        h_acc[...] = jnp.zeros_like(h_acc)

    # Layer 1 partial product on the MXU (bf16 operands by default, f32 accum).
    # x is kept f32 in HBM and cast here in VMEM (no wrapper-side HBM copy).
    h_acc[...] += jnp.dot(x_ref[...].astype(w1_ref.dtype), w1_ref[...],
                          preferred_element_type=jnp.float32)

    @pl.when(k == pl.num_programs(1) - 1)
    def _():
        # Bias + ReLU stay in f32 on the VPU (b1 is (1, 768), broadcasts over batch).
        h = jnp.maximum(h_acc[...] + b1_ref[...], 0.0)
        # Layer 2: cast the MXU operand to the weight dtype; accumulate in f32.
        y = jnp.dot(h.astype(w2_ref.dtype), w2_ref[...],
                    preferred_element_type=jnp.float32)
        o_ref[...] = (y + b2_ref[...]).astype(o_ref.dtype)


def prepare_params(w1, b1, w2, b2, *, param_dtype=jnp.bfloat16):
    """One-time parameter prep (hoisted out of the per-call forward path):
    pad num_classes up to a lane multiple (zero columns -> zero logits, sliced
    off in the forward) and cast the MXU weight operands to `param_dtype`
    (bf16 by default; pass jnp.float32 for exact numerics).  Biases stay f32."""
    hidden = w1.shape[1]
    num_classes = w2.shape[1]
    nc_pad = _round_up(num_classes, LANES)
    b1 = jnp.reshape(b1, (1, hidden)).astype(jnp.float32)
    b2 = jnp.reshape(b2, (1, num_classes)).astype(jnp.float32)
    if nc_pad != num_classes:
        w2 = jnp.pad(w2, ((0, 0), (0, nc_pad - num_classes)))
        b2 = jnp.pad(b2, ((0, 0), (0, nc_pad - num_classes)))
    w1 = w1.astype(param_dtype)
    w2 = w2.astype(param_dtype)
    return w1, b1, w2, b2


@functools.partial(
    jax.jit, static_argnames=("num_classes", "tile_b", "single_buffer_params"))
def classify_layer_forward(x, w1, b1, w2, b2, *, num_classes,
                           tile_b=None, single_buffer_params=True):
    """x: (B, in_features) f32.  w1/b1/w2/b2 from prepare_params().
    Returns (B, num_classes) f32 logits."""
    B, in_features = x.shape
    hidden = w1.shape[1]
    nc_pad = w2.shape[1]
    x_sz = x.dtype.itemsize
    w_sz = w1.dtype.itemsize

    # ---- K (in_features) tiling: stream w1 when it can't stay resident. ----
    tk = _choose_k_tile(in_features)
    nk = pl.cdiv(in_features, tk)

    # ---- VMEM-aware batch tile (respect v7x 64 MiB, exploit v5e/v6e 128 MiB).
    vmem_cap = _vmem_capacity_bytes()
    budget = vmem_cap // 2                       # headroom for Mosaic scratch
    w1_bufs = 1 if (nk == 1 and single_buffer_params) else 2
    const_bufs = 1 if single_buffer_params else 2
    fixed = (w1_bufs * tk * hidden * w_sz                        # w1 tile(s)
             + const_bufs * (hidden * nc_pad * w_sz              # w2
                             + (hidden + nc_pad) * 4))           # biases (f32)
    per_row = (2 * tk * x_sz        # x tile, double-buffered
               + 2 * nc_pad * 4     # output tile, double-buffered (f32)
               + hidden * 4         # f32 accumulator scratch
               + hidden * w_sz      # bf16 copy of h fed to the layer-2 MXU
               + tk * w_sz)         # bf16 copy of the x tile fed to layer 1
    tile_cap = max(SUBLANES,
                   (budget - fixed) // per_row // SUBLANES * SUBLANES)

    if tile_b is None:
        # Target >=4 batch grid steps (megacore sharding on v7x + a full DMA
        # pipeline on all generations) without exceeding the VMEM-derived cap.
        want = _round_up(max(1, pl.cdiv(B, 4)), SUBLANES)
        tile_b = min(1024, tile_cap, want)
    tile_b = min(_round_up(B, SUBLANES), _round_up(max(tile_b, 1), SUBLANES))

    grid = (pl.cdiv(B, tile_b), nk)

    const_mode = pl.Buffered(1) if single_buffer_params else None
    w1_mode = const_mode if nk == 1 else None   # stream (double-buffer) if K-tiled

    flops = 2 * B * (in_features * hidden + hidden * nc_pad)
    bytes_accessed = (x.size * x_sz + w1.size * w_sz + w2.size * w_sz
                      + (b1.size + b2.size) * 4 + B * nc_pad * 4)

    out = pl.pallas_call(
        _classify_layer_kernel,
        out_shape=jax.ShapeDtypeStruct((B, nc_pad), jnp.float32),
        grid=grid,
        in_specs=[
            # x: batch- and K-tiled; Pallas double-buffers this DMA.
            pl.BlockSpec((tile_b, tk), lambda i, k: (i, k)),
            # w1: resident (single-buffered) when nk == 1, streamed otherwise.
            pl.BlockSpec((tk, hidden), lambda i, k: (k, 0), pipeline_mode=w1_mode),
            # Constant blocks: same block every step -> single-buffered, saves VMEM.
            pl.BlockSpec((1, hidden), lambda i, k: (0, 0), pipeline_mode=const_mode),
            pl.BlockSpec((hidden, nc_pad), lambda i, k: (0, 0), pipeline_mode=const_mode),
            pl.BlockSpec((1, nc_pad), lambda i, k: (0, 0), pipeline_mode=const_mode),
        ],
        out_specs=pl.BlockSpec((tile_b, nc_pad), lambda i, k: (i, 0)),
        scratch_shapes=[pltpu.VMEM((tile_b, hidden), jnp.float32)],
        compiler_params=pltpu.CompilerParams(
            dimension_semantics=("parallel", "arbitrary"),
            vmem_limit_bytes=(vmem_cap * 3) // 4,
        ),
        cost_estimate=pl.CostEstimate(
            flops=flops, transcendentals=0, bytes_accessed=bytes_accessed),
    )(x, w1, b1, w2, b2)

    # Strip class padding (padded weight columns are zero -> zero logits).
    return out[:, :num_classes]


def init_params(key, in_features, num_classes, hidden=HIDDEN):
    """Deterministic synthetic init (PyTorch-style uniform bounds)."""
    k1, k2, k3, k4 = jax.random.split(key, 4)
    bound1 = 1.0 / jnp.sqrt(in_features)
    bound2 = 1.0 / jnp.sqrt(hidden)
    w1 = jax.random.uniform(k1, (in_features, hidden), jnp.float32, -bound1, bound1)
    b1 = jax.random.uniform(k2, (1, hidden), jnp.float32, -bound1, bound1)
    w2 = jax.random.uniform(k3, (hidden, num_classes), jnp.float32, -bound2, bound2)
    b2 = jax.random.uniform(k4, (1, num_classes), jnp.float32, -bound2, bound2)
    return w1, b1, w2, b2


if __name__ == "__main__":
    key = jax.random.PRNGKey(0)
    kx, kp = jax.random.split(key)

    batch = 8
    in_features = 32
    num_classes = 10

    x = jax.random.normal(kx, (batch, in_features), dtype=jnp.float32)
    w1, b1, w2, b2 = init_params(kp, in_features, num_classes)
    ref = jnp.maximum(x @ w1 + b1, 0.0) @ w2 + b2

    def forward(xv, params):
        try:
            return jax.block_until_ready(
                classify_layer_forward(xv, *params, num_classes=num_classes))
        except Exception:
            # Fallback if this jax build rejects single-buffered (Buffered(1))
            # constant operands: default double-buffering, identical numerics.
            return jax.block_until_ready(
                classify_layer_forward(xv, *params, num_classes=num_classes,
                                       single_buffer_params=False))

    # f32-weight path: strict check against a plain-JAX reference.
    p32 = prepare_params(w1, b1, w2, b2, param_dtype=jnp.float32)
    out32 = forward(x, p32)
    assert out32.shape == (batch, num_classes)
    assert jnp.allclose(out32, ref, atol=1e-4, rtol=1e-4)

    # Default path: bf16 MXU operands (x cast in-kernel), f32 accumulation.
    # Note: x and the layer-1 activation are quantized to bf16 for the MXU,
    # giving ~1e-2 relative error; bias/ReLU math stays f32.
    pbf16 = prepare_params(w1, b1, w2, b2)
    out_bf16 = forward(x, pbf16)
    assert out_bf16.shape == (batch, num_classes)
    assert bool(jnp.all(jnp.isfinite(out_bf16)))
    assert jnp.allclose(out_bf16, ref, atol=5e-2, rtol=5e-2)

    print("KERNEL_OK")
</pallas_src>

<mosaic_0001>
module attributes {stable_mosaic.version = 11 : i64} {
  func.func @_classify_layer_kernel(%arg0: i32, %arg1: i32, %arg2: memref<8x32xf32, #tpu.memory_space<vmem>>, %arg3: memref<32x768xf32, #tpu.memory_space<vmem>>, %arg4: memref<1x768xf32, #tpu.memory_space<vmem>>, %arg5: memref<768x128xf32, #tpu.memory_space<vmem>>, %arg6: memref<1x128xf32, #tpu.memory_space<vmem>>, %arg7: memref<8x128xf32, #tpu.memory_space<vmem>>, %arg8: memref<8x768xf32, #tpu.memory_space<vmem>>) attributes {dimension_semantics = [#tpu.dimension_semantics<parallel>, #tpu.dimension_semantics<arbitrary>], iteration_bounds = array<i64: 1, 1>, scalar_prefetch = 0 : i64, scratch_operands = 1 : i64, tpu.core_type = #tpu.core_type<tc>, window_params = [{transform_indices = @transform_0, window_bounds = array<i64: 8, 32>}, {pipeline_mode = #tpu.pipeline_mode<synchronous>, transform_indices = @transform_1, window_bounds = array<i64: 32, 768>}, {pipeline_mode = #tpu.pipeline_mode<synchronous>, transform_indices = @transform_2, window_bounds = array<i64: 1, 768>}, {pipeline_mode = #tpu.pipeline_mode<synchronous>, transform_indices = @transform_3, window_bounds = array<i64: 768, 128>}, {pipeline_mode = #tpu.pipeline_mode<synchronous>, transform_indices = @transform_4, window_bounds = array<i64: 1, 128>}, {transform_indices = @transform_5, window_bounds = array<i64: 8, 128>}]} {
    %c0_i32 = arith.constant 0 : i32
    %0 = arith.cmpi eq, %arg1, %c0_i32 : i32
    %1 = arith.extui %0 : i1 to i32
    %c0_i32_0 = arith.constant 0 : i32
    %2 = arith.cmpi ne, %1, %c0_i32_0 : i32
    scf.if %2 {
      %cst_10 = arith.constant 0.000000e+00 : f32
      %12 = vector.broadcast %cst_10 : f32 to vector<8x768xf32>
      %c0_11 = arith.constant 0 : index
      %c0_12 = arith.constant 0 : index
      %13 = vector.load %arg8[%c0_11, %c0_12] : memref<8x768xf32, #tpu.memory_space<vmem>>, vector<8x768xf32>
      tpu.vector_store %arg8[%c0_11, %c0_12], %12 {strides = array<i32>} : memref<8x768xf32, #tpu.memory_space<vmem>>, vector<8x768xf32>,
    } else {
    }
    %c0 = arith.constant 0 : index
    %c0_1 = arith.constant 0 : index
    %3 = vector.load %arg8[%c0, %c0_1] : memref<8x768xf32, #tpu.memory_space<vmem>>, vector<8x768xf32>
    %c0_2 = arith.constant 0 : index
    %c0_3 = arith.constant 0 : index
    %4 = vector.load %arg2[%c0_2, %c0_3] : memref<8x32xf32, #tpu.memory_space<vmem>>, vector<8x32xf32>
    %c0_4 = arith.constant 0 : index
    %c0_5 = arith.constant 0 : index
    %5 = vector.load %arg3[%c0_4, %c0_5] : memref<32x768xf32, #tpu.memory_space<vmem>>, vector<32x768xf32>
    %cst = arith.constant dense<0.000000e+00> : vector<8x768xf32>
    %6 = tpu.matmul %4, %5, %cst {dimension_numbers = #tpu.dot_dimension_numbers<[1], [0], [0], [1], [0, 0, 1, 1], [], []>} : vector<8x32xf32>, vector<32x768xf32>, vector<8x768xf32> -> vector<8x768xf32>
    %7 = arith.addf %3, %6 : vector<8x768xf32>
    %c0_6 = arith.constant 0 : index
    %c0_7 = arith.constant 0 : index
    %8 = vector.load %arg8[%c0_6, %c0_7] : memref<8x768xf32, #tpu.memory_space<vmem>>, vector<8x768xf32>
    tpu.vector_store %arg8[%c0_6, %c0_7], %7 {strides = array<i32>} : memref<8x768xf32, #tpu.memory_space<vmem>>, vector<8x768xf32>,
    %c0_i32_8 = arith.constant 0 : i32
    %9 = arith.cmpi eq, %arg1, %c0_i32_8 : i32
    %10 = arith.extui %9 : i1 to i32
    %c0_i32_9 = arith.constant 0 : i32
    %11 = arith.cmpi ne, %10, %c0_i32_9 : i32
    scf.if %11 {
      %c0_10 = arith.constant 0 : index
      %c0_11 = arith.constant 0 : index
      %12 = vector.load %arg8[%c0_10, %c0_11] : memref<8x768xf32, #tpu.memory_space<vmem>>, vector<8x768xf32>
      %c0_12 = arith.constant 0 : index
      %c0_13 = arith.constant 0 : index
      %13 = vector.load %arg4[%c0_12, %c0_13] : memref<1x768xf32, #tpu.memory_space<vmem>>, vector<1x768xf32>
      %14 = vector.broadcast %13 : vector<1x768xf32> to vector<8x768xf32>
      %15 = arith.addf %12, %14 : vector<8x768xf32>
      %cst_14 = arith.constant 0.000000e+00 : f32
      %16 = vector.broadcast %cst_14 : f32 to vector<8x768xf32>
      %17 = arith.maximumf %15, %16 : vector<8x768xf32>
      %c0_15 = arith.constant 0 : index
      %c0_16 = arith.constant 0 : index
      %18 = vector.load %arg5[%c0_15, %c0_16] : memref<768x128xf32, #tpu.memory_space<vmem>>, vector<768x128xf32>
      %cst_17 = arith.constant dense<0.000000e+00> : vector<8x128xf32>
      %19 = tpu.matmul %17, %18, %cst_17 {dimension_numbers = #tpu.dot_dimension_numbers<[1], [0], [0], [1], [0, 0, 1, 1], [], []>} : vector<8x768xf32>, vector<768x128xf32>, vector<8x128xf32> -> vector<8x128xf32>
      %c0_18 = arith.constant 0 : index
      %c0_19 = arith.constant 0 : index
      %20 = vector.load %arg6[%c0_18, %c0_19] : memref<1x128xf32, #tpu.memory_space<vmem>>, vector<1x128xf32>
      %21 = vector.broadcast %20 : vector<1x128xf32> to vector<8x128xf32>
      %22 = arith.addf %19, %21 : vector<8x128xf32>
      %c0_20 = arith.constant 0 : index
      %c0_21 = arith.constant 0 : index
      %23 = vector.load %arg7[%c0_20, %c0_21] : memref<8x128xf32, #tpu.memory_space<vmem>>, vector<8x128xf32>
      tpu.vector_store %arg7[%c0_20, %c0_21], %22 {strides = array<i32>} : memref<8x128xf32, #tpu.memory_space<vmem>>, vector<8x128xf32>,
    } else {
    }
    return
  }
  func.func @transform_0(%arg0: i32, %arg1: i32) -> (i32, i32) {
    %c0_i32 = arith.constant 0 : i32
    return %arg0, %arg1 : i32, i32
  }
  func.func @transform_1(%arg0: i32, %arg1: i32) -> (i32, i32) {
    %c0_i32 = arith.constant 0 : i32
    %c0_i32_0 = arith.constant 0 : i32
    return %arg1, %c0_i32 : i32, i32
  }
  func.func @transform_2(%arg0: i32, %arg1: i32) -> (i32, i32) {
    %c0_i32 = arith.constant 0 : i32
    %c0_i32_0 = arith.constant 0 : i32
    %c0_i32_1 = arith.constant 0 : i32
    return %c0_i32, %c0_i32_0 : i32, i32
  }
  func.func @transform_3(%arg0: i32, %arg1: i32) -> (i32, i32) {
    %c0_i32 = arith.constant 0 : i32
    %c0_i32_0 = arith.constant 0 : i32
    %c0_i32_1 = arith.constant 0 : i32
    return %c0_i32, %c0_i32_0 : i32, i32
  }
  func.func @transform_4(%arg0: i32, %arg1: i32) -> (i32, i32) {
    %c0_i32 = arith.constant 0 : i32
    %c0_i32_0 = arith.constant 0 : i32
    %c0_i32_1 = arith.constant 0 : i32
    return %c0_i32, %c0_i32_0 : i32, i32
  }
  func.func @transform_5(%arg0: i32, %arg1: i32) -> (i32, i32) {
    %c0_i32 = arith.constant 0 : i32
    %c0_i32_0 = arith.constant 0 : i32
    return %arg0, %c0_i32 : i32, i32
  }
}

module attributes {stable_mosaic.version = 11 : i64} {
  func.func @_classify_layer_kernel(%arg0: i32, %arg1: i32, %arg2: memref<8x32xf32, #tpu.memory_space<vmem>>, %arg3: memref<32x768xf32, #tpu.memory_space<vmem>>, %arg4: memref<1x768xf32, #tpu.memory_space<vmem>>, %arg5: memref<768x128xf32, #tpu.memory_space<vmem>>, %arg6: memref<1x128xf32, #tpu.memory_space<vmem>>, %arg7: memref<8x128xf32, #tpu.memory_space<vmem>>, %arg8: memref<8x768xf32, #tpu.memory_space<vmem>>) attributes {dimension_semantics = [#tpu.dimension_semantics<parallel>, #tpu.dimension_semantics<arbitrary>], iteration_bounds = array<i64: 1, 1>, scalar_prefetch = 0 : i64, scratch_operands = 1 : i64, tpu.core_type = #tpu.core_type<tc>, window_params = [{transform_indices = @transform_0, window_bounds = array<i64: 8, 32>}, {transform_indices = @transform_1, window_bounds = array<i64: 32, 768>}, {pipeline_mode = #tpu.pipeline_mode<synchronous>, transform_indices = @transform_2, window_bounds = array<i64: 1, 768>}, {pipeline_mode = #tpu.pipeline_mode<synchronous>, transform_indices = @transform_3, window_bounds = array<i64: 768, 128>}, {pipeline_mode = #tpu.pipeline_mode<synchronous>, transform_indices = @transform_4, window_bounds = array<i64: 1, 128>}, {transform_indices = @transform_5, window_bounds = array<i64: 8, 128>}]} {
    %c0_i32 = arith.constant 0 : i32
    %0 = arith.cmpi eq, %arg1, %c0_i32 : i32
    %1 = arith.extui %0 : i1 to i32
    %c0_i32_0 = arith.constant 0 : i32
    %2 = arith.cmpi ne, %1, %c0_i32_0 : i32
    scf.if %2 {
      %cst_10 = arith.constant 0.000000e+00 : f32
      %12 = vector.broadcast %cst_10 : f32 to vector<8x768xf32>
      %c0_11 = arith.constant 0 : index
      %c0_12 = arith.constant 0 : index
      %13 = vector.load %arg8[%c0_11, %c0_12] : memref<8x768xf32, #tpu.memory_space<vmem>>, vector<8x768xf32>
      tpu.vector_store %arg8[%c0_11, %c0_12], %12 {strides = array<i32>} : memref<8x768xf32, #tpu.memory_space<vmem>>, vector<8x768xf32>,
    } else {
    }
    %c0 = arith.constant 0 : index
    %c0_1 = arith.constant 0 : index
    %3 = vector.load %arg8[%c0, %c0_1] : memref<8x768xf32, #tpu.memory_space<vmem>>, vector<8x768xf32>
    %c0_2 = arith.constant 0 : index
    %c0_3 = arith.constant 0 : index
    %4 = vector.load %arg2[%c0_2, %c0_3] : memref<8x32xf32, #tpu.memory_space<vmem>>, vector<8x32xf32>
    %c0_4 = arith.constant 0 : index
    %c0_5 = arith.constant 0 : index
    %5 = vector.load %arg3[%c0_4, %c0_5] : memref<32x768xf32, #tpu.memory_space<vmem>>, vector<32x768xf32>
    %cst = arith.constant dense<0.000000e+00> : vector<8x768xf32>
    %6 = tpu.matmul %4, %5, %cst {dimension_numbers = #tpu.dot_dimension_numbers<[1], [0], [0], [1], [0, 0, 1, 1], [], []>} : vector<8x32xf32>, vector<32x768xf32>, vector<8x768xf32> -> vector<8x768xf32>
    %7 = arith.addf %3, %6 : vector<8x768xf32>
    %c0_6 = arith.constant 0 : index
    %c0_7 = arith.constant 0 : index
    %8 = vector.load %arg8[%c0_6, %c0_7] : memref<8x768xf32, #tpu.memory_space<vmem>>, vector<8x768xf32>
    tpu.vector_store %arg8[%c0_6, %c0_7], %7 {strides = array<i32>} : memref<8x768xf32, #tpu.memory_space<vmem>>, vector<8x768xf32>,
    %c0_i32_8 = arith.constant 0 : i32
    %9 = arith.cmpi eq, %arg1, %c0_i32_8 : i32
    %10 = arith.extui %9 : i1 to i32
    %c0_i32_9 = arith.constant 0 : i32
    %11 = arith.cmpi ne, %10, %c0_i32_9 : i32
    scf.if %11 {
      %c0_10 = arith.constant 0 : index
      %c0_11 = arith.constant 0 : index
      %12 = vector.load %arg8[%c0_10, %c0_11] : memref<8x768xf32, #tpu.memory_space<vmem>>, vector<8x768xf32>
      %c0_12 = arith.constant 0 : index
      %c0_13 = arith.constant 0 : index
      %13 = vector.load %arg4[%c0_12, %c0_13] : memref<1x768xf32, #tpu.memory_space<vmem>>, vector<1x768xf32>
      %14 = vector.broadcast %13 : vector<1x768xf32> to vector<8x768xf32>
      %15 = arith.addf %12, %14 : vector<8x768xf32>
      %cst_14 = arith.constant 0.000000e+00 : f32
      %16 = vector.broadcast %cst_14 : f32 to vector<8x768xf32>
      %17 = arith.maximumf %15, %16 : vector<8x768xf32>
      %c0_15 = arith.constant 0 : index
      %c0_16 = arith.constant 0 : index
      %18 = vector.load %arg5[%c0_15, %c0_16] : memref<768x128xf32, #tpu.memory_space<vmem>>, vector<768x128xf32>
      %cst_17 = arith.constant dense<0.000000e+00> : vector<8x128xf32>
      %19 = tpu.matmul %17, %18, %cst_17 {dimension_numbers = #tpu.dot_dimension_numbers<[1], [0], [0], [1], [0, 0, 1, 1], [], []>} : vector<8x768xf32>, vector<768x128xf32>, vector<8x128xf32> -> vector<8x128xf32>
      %c0_18 = arith.constant 0 : index
      %c0_19 = arith.constant 0 : index
      %20 = vector.load %arg6[%c0_18, %c0_19] : memref<1x128xf32, #tpu.memory_space<vmem>>, vector<1x128xf32>
      %21 = vector.broadcast %20 : vector<1x128xf32> to vector<8x128xf32>
      %22 = arith.addf %19, %21 : vector<8x128xf32>
      %c0_20 = arith.constant 0 : index
      %c0_21 = arith.constant 0 : index
      %23 = vector.load %arg7[%c0_20, %c0_21] : memref<8x128xf32, #tpu.memory_space<vmem>>, vector<8x128xf32>
      tpu.vector_store %arg7[%c0_20, %c0_21], %22 {strides = array<i32>} : memref<8x128xf32, #tpu.memory_space<vmem>>, vector<8x128xf32>,
    } else {
    }
    return
  }
  func.func @transform_0(%arg0: i32, %arg1: i32) -> (i32, i32) {
    %c0_i32 = arith.constant 0 : i32
    return %arg0, %arg1 : i32, i32
  }
  func.func @transform_1(%arg0: i32, %arg1: i32) -> (i32, i32) {
    %c0_i32 = arith.constant 0 : i32
    %c0_i32_0 = arith.constant 0 : i32
    return %arg1, %c0_i32 : i32, i32
  }
  func.func @transform_2(%arg0: i32, %arg1: i32) -> (i32, i32) {
    %c0_i32 = arith.constant 0 : i32
    %c0_i32_0 = arith.constant 0 : i32
    %c0_i32_1 = arith.constant 0 : i32
    return %c0_i32, %c0_i32_0 : i32, i32
  }
  func.func @transform_3(%arg0: i32, %arg1: i32) -> (i32, i32) {
    %c0_i32 = arith.constant 0 : i32
    %c0_i32_0 = arith.constant 0 : i32
    %c0_i32_1 = arith.constant 0 : i32
    return %c0_i32, %c0_i32_0 : i32, i32
  }
  func.func @transform_4(%arg0: i32, %arg1: i32) -> (i32, i32) {
    %c0_i32 = arith.constant 0 : i32
    %c0_i32_0 = arith.constant 0 : i32
    %c0_i32_1 = arith.constant 0 : i32
    return %c0_i32, %c0_i32_0 : i32, i32
  }
  func.func @transform_5(%arg0: i32, %arg1: i32) -> (i32, i32) {
    %c0_i32 = arith.constant 0 : i32
    %c0_i32_0 = arith.constant 0 : i32
    return %arg0, %c0_i32 : i32, i32
  }
}

</mosaic_0001>

<llo_original>
// kernel: classify_layer_forward.1
$region0: #{classify_layer_forward.1}
  #allocation0 [shape = 'u32[]', space=smem, size = 0x4, offset = 0x4, fixed_abs, tag = 'smem constant byte address 0x4 - core index']
  #allocation1 [shape = 'u32[72,128]{1,0:T(1,128)}', space=vmem, size = 0x9000, scoped, tag = 'internal scratch']
  #allocation2 [shape = 'f32[8,768]{1,0:T(8,128)}', space=vmem, size = 0x6000, scoped, tag = 'scratch operand']
  %s0 = inlined_call_operand.hbm [shape: f32[8,32], index: 0, kind: input, shape index: {}]
  %s1 = inlined_call_operand.hbm [shape: f32[32,768], index: 1, kind: input, shape index: {}]
  %s2 = inlined_call_operand.hbm [shape: f32[1,768], index: 2, kind: input, shape index: {}]
  %s3 = inlined_call_operand.hbm [shape: f32[768,128], index: 3, kind: input, shape index: {}]
  %s4 = inlined_call_operand.vmem [shape: f32[1,128], index: 4, kind: input, shape index: {}]
  %s5 = inlined_call_operand.hbm [shape: f32[8,128], index: 5, kind: output, shape index: {}]
  %s6 = sld [smem:[#allocation0]]
  $region54: #{classify_layer_forward.1} parent=0
    _
  %s8 = ssub.s32 1, %s6
  %s9 = scalar_select 0, %s8, %s6
  $region1: #{classify_layer_forward.1} parent=0
    #allocation3 [shape = 'u8[4096]{0}', space=vmem, size = 0x1000, scoped, tag = 'input window, operand 0, single buffered']
    #allocation4 [shape = 's32[1]{0}', space=sflag, size = 0x4, scoped, tag = 'scoped memory for classify_layer_forward.1']
    #allocation5 [shape = 's32[1]{0}', space=sflag, size = 0x4, scoped, tag = 'scoped memory for classify_layer_forward.1']
    #allocation6 [shape = 'u8[98304]{0}', space=vmem, size = 0x18000, scoped, tag = 'input window, operand 1, single buffered']
    #allocation7 [shape = 's32[1]{0}', space=sflag, size = 0x4, scoped, tag = 'scoped memory for classify_layer_forward.1']
    #allocation8 [shape = 'u8[3072]{0}', space=vmem, size = 0xc00, scoped, tag = 'input window, operand 2, single buffered']
    #allocation9 [shape = 'u8[393216]{0}', space=vmem, size = 0x60000, scoped, tag = 'input window, operand 3, single buffered']
    #allocation10 [shape = 's32[1]{0}', space=sflag, size = 0x4, scoped, tag = 'scoped memory for classify_layer_forward.1']
    #allocation11 [shape = 'u8[4096]{0}', space=vmem, size = 0x1000, scoped, tag = 'output window, operand 0, single buffered']
    %10 = vsyncpa [#allocation4], 0
    %11 = vsyncpa [#allocation7], 0
    %12 = vsyncpa [#allocation10], 0
    %13 = vsyncpa [#allocation5], 0
    // Predicated region
    $region2: #{classify_layer_forward.1} parent=1 // pred_check
      _
    $region3: #{classify_layer_forward.1} parent=1 // pred_check_branch
      %15 = sbr.rel (0) target = $region5
    $region4: #{classify_layer_forward.1} parent=1 // pred_region
      %17 = vsyncadd [#allocation4], 0
      %s19 = sshll.u32 %s0, 4
      %s20 = int_to_ptr.hbm [resolvable:$true] %s19
      %s21 = sshll.u32 [#allocation3], 4
      %s22 = int_to_ptr.vmem [resolvable:$true] %s21
      %24 = dma.hbm_to_vmem [thread:$0]  %s20, 128, %s22, [#allocation4]
    $region5: #{classify_layer_forward.1} parent=1 // pred_fallthru
      _
    // Predicated region
    $region6: #{classify_layer_forward.1} parent=1 // pred_check
      _
    $region7: #{classify_layer_forward.1} parent=1 // pred_check_branch
      %26 = sbr.rel (0) target = $region9
    $region8: #{classify_layer_forward.1} parent=1 // pred_region
      %28 = vsyncadd [#allocation7], 0
      %s29 = sshll.u32 %s1, 4
      %s30 = int_to_ptr.hbm [resolvable:$true] %s29
      %s31 = sshll.u32 [#allocation6], 4
      %s32 = int_to_ptr.vmem [resolvable:$true] %s31
      %37 = dma.hbm_to_vmem [thread:$0]  %s30, 3072, %s32, [#allocation7], 768, 768, 48
    $region9: #{classify_layer_forward.1} parent=1 // pred_fallthru
      _
    // Predicated region
    $region10: #{classify_layer_forward.1} parent=1 // pred_check
      _
    $region11: #{classify_layer_forward.1} parent=1 // pred_check_branch
      %39 = sbr.rel (0) target = $region13
    $region12: #{classify_layer_forward.1} parent=1 // pred_region
      %41 = vsyncadd [#allocation7], 0
      %s43 = sshll.u32 %s2, 4
      %s44 = int_to_ptr.hbm [resolvable:$true] %s43
      %s45 = sshll.u32 [#allocation8], 4
      %s46 = int_to_ptr.vmem [resolvable:$true] %s45
      %48 = dma.hbm_to_vmem [thread:$0]  %s44, 96, %s46, [#allocation7]
    $region13: #{classify_layer_forward.1} parent=1 // pred_fallthru
      _
    // Predicated region
    $region14: #{classify_layer_forward.1} parent=1 // pred_check
      _
    $region15: #{classify_layer_forward.1} parent=1 // pred_check_branch
      %50 = sbr.rel (0) target = $region17
    $region16: #{classify_layer_forward.1} parent=1 // pred_region
      %52 = vsyncadd [#allocation10], 0
      %s53 = sshll.u32 %s3, 4
      %s54 = int_to_ptr.hbm [resolvable:$true] %s53
      %s55 = sshll.u32 [#allocation9], 4
      %s56 = int_to_ptr.vmem [resolvable:$true] %s55
      %61 = dma.hbm_to_vmem [thread:$0]  %s54, 12288, %s56, [#allocation10], 128, 128, 8
    $region17: #{classify_layer_forward.1} parent=1 // pred_fallthru
      _
    // Predicated region
    $region18: #{classify_layer_forward.1} parent=1 // pred_check
      _
    $region19: #{classify_layer_forward.1} parent=1 // pred_check_branch
      %63 = sbr.rel (0) target = $region21
    $region20: #{classify_layer_forward.1} parent=1 // pred_region
      _
    $region21: #{classify_layer_forward.1} parent=1 // pred_fallthru
      _
    // Predicated region
    $region22: #{classify_layer_forward.1} parent=1 // pred_check
      _
    $region23: #{classify_layer_forward.1} parent=1 // pred_check_branch
      %65 = sbr.rel (0) target = $region25
    $region24: #{classify_layer_forward.1} parent=1 // pred_region
      %67 = dma.done [#allocation4], 128
    $region25: #{classify_layer_forward.1} parent=1 // pred_fallthru
      _
    // Predicated region
    $region26: #{classify_layer_forward.1} parent=1 // pred_check
      _
    $region27: #{classify_layer_forward.1} parent=1 // pred_check_branch
      %69 = sbr.rel (0) target = $region29
    $region28: #{classify_layer_forward.1} parent=1 // pred_region
      %71 = dma.done [#allocation7], 3072
    $region29: #{classify_layer_forward.1} parent=1 // pred_fallthru
      _
    // Predicated region
    $region30: #{classify_layer_forward.1} parent=1 // pred_check
      _
    $region31: #{classify_layer_forward.1} parent=1 // pred_check_branch
      %73 = sbr.rel (0) target = $region33
    $region32: #{classify_layer_forward.1} parent=1 // pred_region
      %75 = dma.done [#allocation7], 96
    $region33: #{classify_layer_forward.1} parent=1 // pred_fallthru
      _
    // Predicated region
    $region34: #{classify_layer_forward.1} parent=1 // pred_check
      _
    $region35: #{classify_layer_forward.1} parent=1 // pred_check_branch
      %77 = sbr.rel (0) target = $region37
    $region36: #{classify_layer_forward.1} parent=1 // pred_region
      %79 = dma.done [#allocation10], 12288
    $region37: #{classify_layer_forward.1} parent=1 // pred_fallthru
      _
    %p80 = scmp.eq.s32.totalorder 0, 0
    // Predicated region
    $region38: #{classify_layer_forward.1} parent=1 // pred_check
      %p81 = pneg %p80
    $region39: #{classify_layer_forward.1} parent=1 // pred_check_branch
      %83 = sbr.rel (%p81) target = $region41
    $region40: #{classify_layer_forward.1} parent=1 // pred_region
      %84 = vst [vmem:[#allocation2] sm:$0xff] 0.0
      %85 = vst [vmem:[#allocation2 + $0x8] sm:$0xff] 0.0
      %86 = vst [vmem:[#allocation2 + $0x10] sm:$0xff] 0.0
      %87 = vst [vmem:[#allocation2 + $0x18] sm:$0xff] 0.0
      %88 = vst [vmem:[#allocation2 + $0x20] sm:$0xff] 0.0
      %89 = vst [vmem:[#allocation2 + $0x28] sm:$0xff] 0.0
    $region41: #{classify_layer_forward.1} parent=1 // pred_fallthru
      _
    %v90 = vld [vmem:[#allocation2] sm:$0xff]
    %v91 = vld [vmem:[#allocation2 + $0x8] sm:$0xff]
    %v92 = vld [vmem:[#allocation2 + $0x10] sm:$0xff]
    %v93 = vld [vmem:[#allocation2 + $0x18] sm:$0xff]
    %v94 = vld [vmem:[#allocation2 + $0x20] sm:$0xff]
    %v95 = vld [vmem:[#allocation2 + $0x28] sm:$0xff]
    %v96 = vld [vmem:[#allocation3] sm:$0xff]
    %v97 = vld [vmem:[#allocation6] sm:$0xff]
    %v98 = vld [vmem:[#allocation6 + $0x8] sm:$0xff]
    %v99 = vld [vmem:[#allocation6 + $0x10] sm:$0xff]
    %v100 = vld [vmem:[#allocation6 + $0x18] sm:$0xff]
    %v101 = vld [vmem:[#allocation6 + $0x20] sm:$0xff]
    %v102 = vld [vmem:[#allocation6 + $0x28] sm:$0xff]
    %v103 = vld [vmem:[#allocation6 + $0x30] sm:$0xff]
    %v104 = vld [vmem:[#allocation6 + $0x38] sm:$0xff]
    %v105 = vld [vmem:[#allocation6 + $0x40] sm:$0xff]
    %v106 = vld [vmem:[#allocation6 + $0x48] sm:$0xff]
    %v107 = vld [vmem:[#allocation6 + $0x50] sm:$0xff]
    %v108 = vld [vmem:[#allocation6 + $0x58] sm:$0xff]
    %v109 = vld [vmem:[#allocation6 + $0x60] sm:$0xff]
    %v110 = vld [vmem:[#allocation6 + $0x68] sm:$0xff]
    %v111 = vld [vmem:[#allocation6 + $0x70] sm:$0xff]
    %v112 = vld [vmem:[#allocation6 + $0x78] sm:$0xff]
    %v113 = vld [vmem:[#allocation6 + $0x80] sm:$0xff]
    %v114 = vld [vmem:[#allocation6 + $0x88] sm:$0xff]
    %v115 = vld [vmem:[#allocation6 + $0x90] sm:$0xff]
    %v116 = vld [vmem:[#allocation6 + $0x98] sm:$0xff]
    %v117 = vld [vmem:[#allocation6 + $0xa0] sm:$0xff]
    %v118 = vld [vmem:[#allocation6 + $0xa8] sm:$0xff]
    %v119 = vld [vmem:[#allocation6 + $0xb0] sm:$0xff]
    %v120 = vld [vmem:[#allocation6 + $0xb8] sm:$0xff]
    %vm121 = vcmask 261120
    %v123 = vsel %vm121, %v96, 0
    %125 = vmatpush.msra.mxu0 0.0
    %126 = vmatpush.msra.mxu0 0.0
    %127 = vmatpush.msra.mxu0 0.0
    %128 = vmatpush.msra.mxu0 0.0
    %129 = vmatpush.msra.mxu0 0.0
    %130 = vmatpush.msra.mxu0 0.0
    %131 = vmatpush.msra.mxu0 0.0
    %132 = vmatpush.msra.mxu0 0.0
    %133 = vmatpush.msra.mxu0 0.0
    %134 = vmatpush.msra.mxu0 0.0
    %135 = vmatpush.msra.mxu0 0.0
    %136 = vmatpush.msra.mxu0 0.0
    %137 = vmatpush.msra.mxu0 %v115
    %138 = vmatpush.msra.mxu0 %v109
    %139 = vmatpush.msra.mxu0 %v103
    %140 = vmatpush.msra.mxu0 %v97
    %141 = vmatmul.f32.gmra.mxu0 %v123
    %v142 = vpop.f32.mrf.mxu0
    %v143 = vadd.f32 0.0, %v142
    %144 = vdwg.mxu0
    %145 = vmatpush.msra.mxu0 0.0
    %146 = vmatpush.msra.mxu0 0.0
    %147 = vmatpush.msra.mxu0 0.0
    %148 = vmatpush.msra.mxu0 0.0
    %149 = vmatpush.msra.mxu0 0.0
    %150 = vmatpush.msra.mxu0 0.0
    %151 = vmatpush.msra.mxu0 0.0
    %152 = vmatpush.msra.mxu0 0.0
    %153 = vmatpush.msra.mxu0 0.0
    %154 = vmatpush.msra.mxu0 0.0
    %155 = vmatpush.msra.mxu0 0.0
    %156 = vmatpush.msra.mxu0 0.0
    %157 = vmatpush.msra.mxu0 %v116
    %158 = vmatpush.msra.mxu0 %v110
    %159 = vmatpush.msra.mxu0 %v104
    %160 = vmatpush.msra.mxu0 %v98
    %161 = vmatmul.f32.gmra.mxu0 %v123
    %v162 = vpop.f32.mrf.mxu0
    %v163 = vadd.f32 0.0, %v162
    %164 = vdwg.mxu0
    %165 = vmatpush.msra.mxu0 0.0
    %166 = vmatpush.msra.mxu0 0.0
    %167 = vmatpush.msra.mxu0 0.0
    %168 = vmatpush.msra.mxu0 0.0
    %169 = vmatpush.msra.mxu0 0.0
    %170 = vmatpush.msra.mxu0 0.0
    %171 = vmatpush.msra.mxu0 0.0
    %172 = vmatpush.msra.mxu0 0.0
    %173 = vmatpush.msra.mxu0 0.0
    %174 = vmatpush.msra.mxu0 0.0
    %175 = vmatpush.msra.mxu0 0.0
    %176 = vmatpush.msra.mxu0 0.0
    %177 = vmatpush.msra.mxu0 %v117
    %178 = vmatpush.msra.mxu0 %v111
    %179 = vmatpush.msra.mxu0 %v105
    %180 = vmatpush.msra.mxu0 %v99
    %181 = vmatmul.f32.gmra.mxu0 %v123
    %v182 = vpop.f32.mrf.mxu0
    %v183 = vadd.f32 0.0, %v182
    %184 = vdwg.mxu0
    %185 = vmatpush.msra.mxu0 0.0
    %186 = vmatpush.msra.mxu0 0.0
    %187 = vmatpush.msra.mxu0 0.0
    %188 = vmatpush.msra.mxu0 0.0
    %189 = vmatpush.msra.mxu0 0.0
    %190 = vmatpush.msra.mxu0 0.0
    %191 = vmatpush.msra.mxu0 0.0
    %192 = vmatpush.msra.mxu0 0.0
    %193 = vmatpush.msra.mxu0 0.0
    %194 = vmatpush.msra.mxu0 0.0
    %195 = vmatpush.msra.mxu0 0.0
    %196 = vmatpush.msra.mxu0 0.0
    %197 = vmatpush.msra.mxu0 %v118
    %198 = vmatpush.msra.mxu0 %v112
    %199 = vmatpush.msra.mxu0 %v106
    %200 = vmatpush.msra.mxu0 %v100
    %201 = vmatmul.f32.gmra.mxu0 %v123
    %v202 = vpop.f32.mrf.mxu0
    %v203 = vadd.f32 0.0, %v202
    %204 = vdwg.mxu0
    %205 = vmatpush.msra.mxu0 0.0
    %206 = vmatpush.msra.mxu0 0.0
    %207 = vmatpush.msra.mxu0 0.0
    %208 = vmatpush.msra.mxu0 0.0
    %209 = vmatpush.msra.mxu0 0.0
    %210 = vmatpush.msra.mxu0 0.0
    %211 = vmatpush.msra.mxu0 0.0
    %212 = vmatpush.msra.mxu0 0.0
    %213 = vmatpush.msra.mxu0 0.0
    %214 = vmatpush.msra.mxu0 0.0
    %215 = vmatpush.msra.mxu0 0.0
    %216 = vmatpush.msra.mxu0 0.0
    %217 = vmatpush.msra.mxu0 %v119
    %218 = vmatpush.msra.mxu0 %v113
    %219 = vmatpush.msra.mxu0 %v107
    %220 = vmatpush.msra.mxu0 %v101
    %221 = vmatmul.f32.gmra.mxu0 %v123
    %v222 = vpop.f32.mrf.mxu0
    %v223 = vadd.f32 0.0, %v222
    %224 = vdwg.mxu0
    %225 = vmatpush.msra.mxu0 0.0
    %226 = vmatpush.msra.mxu0 0.0
    %227 = vmatpush.msra.mxu0 0.0
    %228 = vmatpush.msra.mxu0 0.0
    %229 = vmatpush.msra.mxu0 0.0
    %230 = vmatpush.msra.mxu0 0.0
    %231 = vmatpush.msra.mxu0 0.0
    %232 = vmatpush.msra.mxu0 0.0
    %233 = vmatpush.msra.mxu0 0.0
    %234 = vmatpush.msra.mxu0 0.0
    %235 = vmatpush.msra.mxu0 0.0
    %236 = vmatpush.msra.mxu0 0.0
    %237 = vmatpush.msra.mxu0 %v120
    %238 = vmatpush.msra.mxu0 %v114
    %239 = vmatpush.msra.mxu0 %v108
    %240 = vmatpush.msra.mxu0 %v102
    %241 = vmatmul.f32.gmra.mxu0 %v123
    %v242 = vpop.f32.mrf.mxu0
    %v243 = vadd.f32 0.0, %v242
    %244 = vdwg.mxu0
    %v245 = vadd.f32 %v90, %v143
    %v246 = vadd.f32 %v91, %v163
    %v247 = vadd.f32 %v92, %v183
    %v248 = vadd.f32 %v93, %v203
    %v249 = vadd.f32 %v94, %v223
    %v250 = vadd.f32 %v95, %v243
    %251 = vst [vmem:[#allocation2] sm:$0xff] %v245
    %252 = vst [vmem:[#allocation2 + $0x8] sm:$0xff] %v246
    %253 = vst [vmem:[#allocation2 + $0x10] sm:$0xff] %v247
    %254 = vst [vmem:[#allocation2 + $0x18] sm:$0xff] %v248
    %255 = vst [vmem:[#allocation2 + $0x20] sm:$0xff] %v249
    %256 = vst [vmem:[#allocation2 + $0x28] sm:$0xff] %v250
    // Predicated region
    $region42: #{classify_layer_forward.1} parent=1 // pred_check
      %p257 = pneg %p80
    $region43: #{classify_layer_forward.1} parent=1 // pred_check_branch
      %259 = sbr.rel (%p257) target = $region45
    $region44: #{classify_layer_forward.1} parent=1 // pred_region
      %v260 = vld [vmem:[#allocation2] sm:$0xff]
      %v261 = vld [vmem:[#allocation2 + $0x8] sm:$0xff]
      %v262 = vld [vmem:[#allocation2 + $0x10] sm:$0xff]
      %v263 = vld [vmem:[#allocation2 + $0x18] sm:$0xff]
      %v264 = vld [vmem:[#allocation2 + $0x20] sm:$0xff]
      %v265 = vld [vmem:[#allocation2 + $0x28] sm:$0xff]
      %v266 = vld [vmem:[#allocation8] sm:$0x3f]
      %v268 = vperm.slane %v266, 0
      %v269 = vperm.slane %v266, 1
      %v270 = vperm.slane %v266, 2
      %v271 = vperm.slane %v266, 3
      %v272 = vperm.slane %v266, 4
      %v273 = vperm.slane %v266, 5
      %v280 = vadd.f32 %v260, %v268
      %v281 = vadd.f32 %v261, %v269
      %v282 = vadd.f32 %v262, %v270
      %v283 = vadd.f32 %v263, %v271
      %v284 = vadd.f32 %v264, %v272
      %v285 = vadd.f32 %v265, %v273
      %v286 = vmax.f32 %v280, 0.0
      %v287 = vmax.f32 %v281, 0.0
      %v288 = vmax.f32 %v282, 0.0
      %v289 = vmax.f32 %v283, 0.0
      %v290 = vmax.f32 %v284, 0.0
      %v291 = vmax.f32 %v285, 0.0
      %v292 = vld [vmem:[#allocation9] sm:$0xff]
      %v293 = vld [vmem:[#allocation9 + $0x8] sm:$0xff]
      %v294 = vld [vmem:[#allocation9 + $0x10] sm:$0xff]
      %v295 = vld [vmem:[#allocation9 + $0x18] sm:$0xff]
      %v296 = vld [vmem:[#allocation9 + $0x20] sm:$0xff]
      %v297 = vld [vmem:[#allocation9 + $0x28] sm:$0xff]
      %v298 = vld [vmem:[#allocation9 + $0x30] sm:$0xff]
      %v299 = vld [vmem:[#allocation9 + $0x38] sm:$0xff]
      %v300 = vld [vmem:[#allocation9 + $0x40] sm:$0xff]
      %v301 = vld [vmem:[#allocation9 + $0x48] sm:$0xff]
      %v302 = vld [vmem:[#allocation9 + $0x50] sm:$0xff]
      %v303 = vld [vmem:[#allocation9 + $0x58] sm:$0xff]
      %v304 = vld [vmem:[#allocation9 + $0x60] sm:$0xff]
      %v305 = vld [vmem:[#allocation9 + $0x68] sm:$0xff]
      %v306 = vld [vmem:[#allocation9 + $0x70] sm:$0xff]
      %v307 = vld [vmem:[#allocation9 + $0x78] sm:$0xff]
      %v308 = vld [vmem:[#allocation9 + $0x80] sm:$0xff]
      %v309 = vld [vmem:[#allocation9 + $0x88] sm:$0xff]
      %v310 = vld [vmem:[#allocation9 + $0x90] sm:$0xff]
      %v311 = vld [vmem:[#allocation9 + $0x98] sm:$0xff]
      %v312 = vld [vmem:[#allocation9 + $0xa0] sm:$0xff]
      %v313 = vld [vmem:[#allocation9 + $0xa8] sm:$0xff]
      %v314 = vld [vmem:[#allocation9 + $0xb0] sm:$0xff]
      %v315 = vld [vmem:[#allocation9 + $0xb8] sm:$0xff]
      %v316 = vld [vmem:[#allocation9 + $0xc0] sm:$0xff]
      %v317 = vld [vmem:[#allocation9 + $0xc8] sm:$0xff]
      %v318 = vld [vmem:[#allocation9 + $0xd0] sm:$0xff]
      %v319 = vld [vmem:[#allocation9 + $0xd8] sm:$0xff]
      %v320 = vld [vmem:[#allocation9 + $0xe0] sm:$0xff]
      %v321 = vld [vmem:[#allocation9 + $0xe8] sm:$0xff]
      %v322 = vld [vmem:[#allocation9 + $0xf0] sm:$0xff]
      %v323 = vld [vmem:[#allocation9 + $0xf8] sm:$0xff]
      %v324 = vld [vmem:[#allocation9 + $0x100] sm:$0xff]
      %v325 = vld [vmem:[#allocation9 + $0x108] sm:$0xff]
      %v326 = vld [vmem:[#allocation9 + $0x110] sm:$0xff]
      %v327 = vld [vmem:[#allocation9 + $0x118] sm:$0xff]
      %v328 = vld [vmem:[#allocation9 + $0x120] sm:$0xff]
      %v329 = vld [vmem:[#allocation9 + $0x128] sm:$0xff]
      %v330 = vld [vmem:[#allocation9 + $0x130] sm:$0xff]
      %v331 = vld [vmem:[#allocation9 + $0x138] sm:$0xff]
      %v332 = vld [vmem:[#allocation9 + $0x140] sm:$0xff]
      %v333 = vld [vmem:[#allocation9 + $0x148] sm:$0xff]
      %v334 = vld [vmem:[#allocation9 + $0x150] sm:$0xff]
      %v335 = vld [vmem:[#allocation9 + $0x158] sm:$0xff]
      %v336 = vld [vmem:[#allocation9 + $0x160] sm:$0xff]
      %v337 = vld [vmem:[#allocation9 + $0x168] sm:$0xff]
      %v338 = vld [vmem:[#allocation9 + $0x170] sm:$0xff]
      %v339 = vld [vmem:[#allocation9 + $0x178] sm:$0xff]
      %v340 = vld [vmem:[#allocation9 + $0x180] sm:$0xff]
      %v341 = vld [vmem:[#allocation9 + $0x188] sm:$0xff]
      %v342 = vld [vmem:[#allocation9 + $0x190] sm:$0xff]
      %v343 = vld [vmem:[#allocation9 + $0x198] sm:$0xff]
      %v344 = vld [vmem:[#allocation9 + $0x1a0] sm:$0xff]
      %v345 = vld [vmem:[#allocation9 + $0x1a8] sm:$0xff]
      %v346 = vld [vmem:[#allocation9 + $0x1b0] sm:$0xff]
      %v347 = vld [vmem:[#allocation9 + $0x1b8] sm:$0xff]
      %v348 = vld [vmem:[#allocation9 + $0x1c0] sm:$0xff]
      %v349 = vld [vmem:[#allocation9 + $0x1c8] sm:$0xff]
      %v350 = vld [vmem:[#allocation9 + $0x1d0] sm:$0xff]
      %v351 = vld [vmem:[#allocation9 + $0x1d8] sm:$0xff]
      %v352 = vld [vmem:[#allocation9 + $0x1e0] sm:$0xff]
      %v353 = vld [vmem:[#allocation9 + $0x1e8] sm:$0xff]
      %v354 = vld [vmem:[#allocation9 + $0x1f0] sm:$0xff]
      %v355 = vld [vmem:[#allocation9 + $0x1f8] sm:$0xff]
      %v356 = vld [vmem:[#allocation9 + $0x200] sm:$0xff]
      %v357 = vld [vmem:[#allocation9 + $0x208] sm:$0xff]
      %v358 = vld [vmem:[#allocation9 + $0x210] sm:$0xff]
      %v359 = vld [vmem:[#allocation9 + $0x218] sm:$0xff]
      %v360 = vld [vmem:[#allocation9 + $0x220] sm:$0xff]
      %v361 = vld [vmem:[#allocation9 + $0x228] sm:$0xff]
      %v362 = vld [vmem:[#allocation9 + $0x230] sm:$0xff]
      %v363 = vld [vmem:[#allocation9 + $0x238] sm:$0xff]
      %v364 = vld [vmem:[#allocation9 + $0x240] sm:$0xff]
      %v365 = vld [vmem:[#allocation9 + $0x248] sm:$0xff]
      %v366 = vld [vmem:[#allocation9 + $0x250] sm:$0xff]
      %v367 = vld [vmem:[#allocation9 + $0x258] sm:$0xff]
      %v368 = vld [vmem:[#allocation9 + $0x260] sm:$0xff]
      %v369 = vld [vmem:[#allocation9 + $0x268] sm:$0xff]
      %v370 = vld [vmem:[#allocation9 + $0x270] sm:$0xff]
      %v371 = vld [vmem:[#allocation9 + $0x278] sm:$0xff]
      %v372 = vld [vmem:[#allocation9 + $0x280] sm:$0xff]
      %v373 = vld [vmem:[#allocation9 + $0x288] sm:$0xff]
      %v374 = vld [vmem:[#allocation9 + $0x290] sm:$0xff]
      %v375 = vld [vmem:[#allocation9 + $0x298] sm:$0xff]
      %v376 = vld [vmem:[#allocation9 + $0x2a0] sm:$0xff]
      %v377 = vld [vmem:[#allocation9 + $0x2a8] sm:$0xff]
      %v378 = vld [vmem:[#allocation9 + $0x2b0] sm:$0xff]
      %v379 = vld [vmem:[#allocation9 + $0x2b8] sm:$0xff]
      %v380 = vld [vmem:[#allocation9 + $0x2c0] sm:$0xff]
      %v381 = vld [vmem:[#allocation9 + $0x2c8] sm:$0xff]
      %v382 = vld [vmem:[#allocation9 + $0x2d0] sm:$0xff]
      %v383 = vld [vmem:[#allocation9 + $0x2d8] sm:$0xff]
      %v384 = vld [vmem:[#allocation9 + $0x2e0] sm:$0xff]
      %v385 = vld [vmem:[#allocation9 + $0x2e8] sm:$0xff]
      %v386 = vld [vmem:[#allocation9 + $0x2f0] sm:$0xff]
      %v387 = vld [vmem:[#allocation9 + $0x2f8] sm:$0xff]
      %v388 = vld [vmem:[%s4] sm:$0x1]
      %v390 = vperm.slane %v388, 0
      %392 = vmatpush.msra.mxu0 %v307
      %393 = vmatpush.msra.mxu0 %v306
      %394 = vmatpush.msra.mxu0 %v305
      %395 = vmatpush.msra.mxu0 %v304
      %396 = vmatpush.msra.mxu0 %v303
      %397 = vmatpush.msra.mxu0 %v302
      %398 = vmatpush.msra.mxu0 %v301
      %399 = vmatpush.msra.mxu0 %v300
      %400 = vmatpush.msra.mxu0 %v299
      %401 = vmatpush.msra.mxu0 %v298
      %402 = vmatpush.msra.mxu0 %v297
      %403 = vmatpush.msra.mxu0 %v296
      %404 = vmatpush.msra.mxu0 %v295
      %405 = vmatpush.msra.mxu0 %v294
      %406 = vmatpush.msra.mxu0 %v293
      %407 = vmatpush.msra.mxu0 %v292
      %408 = vmatmul.f32.gmra.mxu0 %v286
      %v409 = vpop.f32.mrf.mxu0
      %v410 = vadd.f32 %v390, %v409
      %411 = vdwg.mxu0
      %412 = vmatpush.msra.mxu0 %v323
      %413 = vmatpush.msra.mxu0 %v322
      %414 = vmatpush.msra.mxu0 %v321
      %415 = vmatpush.msra.mxu0 %v320
      %416 = vmatpush.msra.mxu0 %v319
      %417 = vmatpush.msra.mxu0 %v318
      %418 = vmatpush.msra.mxu0 %v317
      %419 = vmatpush.msra.mxu0 %v316
      %420 = vmatpush.msra.mxu0 %v315
      %421 = vmatpush.msra.mxu0 %v314
      %422 = vmatpush.msra.mxu0 %v313
      %423 = vmatpush.msra.mxu0 %v312
      %424 = vmatpush.msra.mxu0 %v311
      %425 = vmatpush.msra.mxu0 %v310
      %426 = vmatpush.msra.mxu0 %v309
      %427 = vmatpush.msra.mxu0 %v308
      %428 = vmatmul.f32.gmra.mxu0 %v287
      %v429 = vpop.f32.mrf.mxu0
      %v430 = vadd.f32 %v410, %v429
      %431 = vdwg.mxu0
      %432 = vmatpush.msra.mxu0 %v339
      %433 = vmatpush.msra.mxu0 %v338
      %434 = vmatpush.msra.mxu0 %v337
      %435 = vmatpush.msra.mxu0 %v336
      %436 = vmatpush.msra.mxu0 %v335
      %437 = vmatpush.msra.mxu0 %v334
      %438 = vmatpush.msra.mxu0 %v333
      %439 = vmatpush.msra.mxu0 %v332
      %440 = vmatpush.msra.mxu0 %v331
      %441 = vmatpush.msra.mxu0 %v330
      %442 = vmatpush.msra.mxu0 %v329
      %443 = vmatpush.msra.mxu0 %v328
      %444 = vmatpush.msra.mxu0 %v327
      %445 = vmatpush.msra.mxu0 %v326
      %446 = vmatpush.msra.mxu0 %v325
      %447 = vmatpush.msra.mxu0 %v324
      %448 = vmatmul.f32.gmra.mxu0 %v288
      %v449 = vpop.f32.mrf.mxu0
      %v450 = vadd.f32 %v430, %v449
      %451 = vdwg.mxu0
      %452 = vmatpush.msra.mxu0 %v355
      %453 = vmatpush.msra.mxu0 %v354
      %454 = vmatpush.msra.mxu0 %v353
      %455 = vmatpush.msra.mxu0 %v352
      %456 = vmatpush.msra.mxu0 %v351
      %457 = vmatpush.msra.mxu0 %v350
      %458 = vmatpush.msra.mxu0 %v349
      %459 = vmatpush.msra.mxu0 %v348
      %460 = vmatpush.msra.mxu0 %v347
      %461 = vmatpush.msra.mxu0 %v346
      %462 = vmatpush.msra.mxu0 %v345
      %463 = vmatpush.msra.mxu0 %v344
      %464 = vmatpush.msra.mxu0 %v343
      %465 = vmatpush.msra.mxu0 %v342
      %466 = vmatpush.msra.mxu0 %v341
      %467 = vmatpush.msra.mxu0 %v340
      %468 = vmatmul.f32.gmra.mxu0 %v289
      %v469 = vpop.f32.mrf.mxu0
      %v470 = vadd.f32 %v450, %v469
      %471 = vdwg.mxu0
      %472 = vmatpush.msra.mxu0 %v371
      %473 = vmatpush.msra.mxu0 %v370
      %474 = vmatpush.msra.mxu0 %v369
      %475 = vmatpush.msra.mxu0 %v368
      %476 = vmatpush.msra.mxu0 %v367
      %477 = vmatpush.msra.mxu0 %v366
      %478 = vmatpush.msra.mxu0 %v365
      %479 = vmatpush.msra.mxu0 %v364
      %480 = vmatpush.msra.mxu0 %v363
      %481 = vmatpush.msra.mxu0 %v362
      %482 = vmatpush.msra.mxu0 %v361
      %483 = vmatpush.msra.mxu0 %v360
      %484 = vmatpush.msra.mxu0 %v359
      %485 = vmatpush.msra.mxu0 %v358
      %486 = vmatpush.msra.mxu0 %v357
      %487 = vmatpush.msra.mxu0 %v356
      %488 = vmatmul.f32.gmra.mxu0 %v290
      %v489 = vpop.f32.mrf.mxu0
      %v490 = vadd.f32 %v470, %v489
      %491 = vdwg.mxu0
      %492 = vmatpush.msra.mxu0 %v387
      %493 = vmatpush.msra.mxu0 %v386
      %494 = vmatpush.msra.mxu0 %v385
      %495 = vmatpush.msra.mxu0 %v384
      %496 = vmatpush.msra.mxu0 %v383
      %497 = vmatpush.msra.mxu0 %v382
      %498 = vmatpush.msra.mxu0 %v381
      %499 = vmatpush.msra.mxu0 %v380
      %500 = vmatpush.msra.mxu0 %v379
      %501 = vmatpush.msra.mxu0 %v378
      %502 = vmatpush.msra.mxu0 %v377
      %503 = vmatpush.msra.mxu0 %v376
      %504 = vmatpush.msra.mxu0 %v375
      %505 = vmatpush.msra.mxu0 %v374
      %506 = vmatpush.msra.mxu0 %v373
      %507 = vmatpush.msra.mxu0 %v372
      %508 = vmatmul.f32.gmra.mxu0 %v291
      %v509 = vpop.f32.mrf.mxu0
      %v510 = vadd.f32 %v490, %v509
      %511 = vdwg.mxu0
      %512 = vst [vmem:[#allocation11] sm:$0xff] %v510
    $region45: #{classify_layer_forward.1} parent=1 // pred_fallthru
      _
    // Predicated region
    $region46: #{classify_layer_forward.1} parent=1 // pred_check
      _
    $region47: #{classify_layer_forward.1} parent=1 // pred_check_branch
      %514 = sbr.rel (0) target = $region49
    $region48: #{classify_layer_forward.1} parent=1 // pred_region
      %516 = vsyncadd [#allocation5], 0
      %s518 = sshll.u32 [#allocation11], 4
      %s519 = int_to_ptr.vmem [resolvable:$true] %s518
      %s520 = sshll.u32 %s5, 4
      %s521 = int_to_ptr.hbm [resolvable:$true] %s520
      %523 = dma.vmem_to_hbm [thread:$0]  %s519, 128, %s521, [#allocation5]
    $region49: #{classify_layer_forward.1} parent=1 // pred_fallthru
      _
    // Predicated region
    $region50: #{classify_layer_forward.1} parent=1 // pred_check
      _
    $region51: #{classify_layer_forward.1} parent=1 // pred_check_branch
      %525 = sbr.rel (0) target = $region53
    $region52: #{classify_layer_forward.1} parent=1 // pred_region
      %527 = dma.done [#allocation5], 128
    $region53: #{classify_layer_forward.1} parent=1 // pred_fallthru
      _
    %528 = vsyncpa [#allocation4], 1
    %529 = vsyncpa [#allocation7], 1
    %530 = vsyncpa [#allocation10], 1
    %531 = vsyncpa [#allocation5], 1

// kernel: classify_layer_forward.1
$region0: #{classify_layer_forward.1}
  #allocation0 [shape = 'u32[]', space=smem, size = 0x4, offset = 0x4, fixed_abs, tag = 'smem constant byte address 0x4 - core index']
  #allocation1 [shape = 'u32[72,128]{1,0:T(1,128)}', space=vmem, size = 0x9000, scoped, tag = 'internal scratch']
  #allocation2 [shape = 'f32[8,768]{1,0:T(8,128)}', space=vmem, size = 0x6000, scoped, tag = 'scratch operand']
  %s0 = inlined_call_operand.hbm [shape: f32[8,32], index: 0, kind: input, shape index: {}]
  %s1 = inlined_call_operand.hbm [shape: f32[32,768], index: 1, kind: input, shape index: {}]
  %s2 = inlined_call_operand.hbm [shape: f32[1,768], index: 2, kind: input, shape index: {}]
  %s3 = inlined_call_operand.hbm [shape: f32[768,128], index: 3, kind: input, shape index: {}]
  %s4 = inlined_call_operand.vmem [shape: f32[1,128], index: 4, kind: input, shape index: {}]
  %s5 = inlined_call_operand.hbm [shape: f32[8,128], index: 5, kind: output, shape index: {}]
  %s6 = sld [smem:[#allocation0]]
  $region54: #{classify_layer_forward.1} parent=0
    _
  %s8 = ssub.s32 1, %s6
  %s9 = scalar_select 0, %s8, %s6
  $region1: #{classify_layer_forward.1} parent=0
    #allocation3 [shape = 'u8[4096]{0}', space=vmem, size = 0x1000, scoped, tag = 'input window, operand 0, single buffered']
    #allocation4 [shape = 's32[1]{0}', space=sflag, size = 0x4, scoped, tag = 'scoped memory for classify_layer_forward.1']
    #allocation5 [shape = 's32[1]{0}', space=sflag, size = 0x4, scoped, tag = 'scoped memory for classify_layer_forward.1']
    #allocation6 [shape = 'u8[98304]{0}', space=vmem, size = 0x18000, scoped, tag = 'input window, operand 1, single buffered']
    #allocation7 [shape = 's32[1]{0}', space=sflag, size = 0x4, scoped, tag = 'scoped memory for classify_layer_forward.1']
    #allocation8 [shape = 'u8[3072]{0}', space=vmem, size = 0xc00, scoped, tag = 'input window, operand 2, single buffered']
    #allocation9 [shape = 'u8[393216]{0}', space=vmem, size = 0x60000, scoped, tag = 'input window, operand 3, single buffered']
    #allocation10 [shape = 's32[1]{0}', space=sflag, size = 0x4, scoped, tag = 'scoped memory for classify_layer_forward.1']
    #allocation11 [shape = 'u8[4096]{0}', space=vmem, size = 0x1000, scoped, tag = 'output window, operand 0, single buffered']
    %10 = vsyncpa [#allocation4], 0
    %11 = vsyncpa [#allocation7], 0
    %12 = vsyncpa [#allocation10], 0
    %13 = vsyncpa [#allocation5], 0
    // Predicated region
    $region2: #{classify_layer_forward.1} parent=1 // pred_check
      _
    $region3: #{classify_layer_forward.1} parent=1 // pred_check_branch
      %15 = sbr.rel (0) target = $region5
    $region4: #{classify_layer_forward.1} parent=1 // pred_region
      %17 = vsyncadd [#allocation4], 0
      %s19 = sshll.u32 %s0, 4
      %s20 = int_to_ptr.hbm [resolvable:$true] %s19
      %s21 = sshll.u32 [#allocation3], 4
      %s22 = int_to_ptr.vmem [resolvable:$true] %s21
      %24 = dma.hbm_to_vmem [thread:$0]  %s20, 128, %s22, [#allocation4]
    $region5: #{classify_layer_forward.1} parent=1 // pred_fallthru
      _
    // Predicated region
    $region6: #{classify_layer_forward.1} parent=1 // pred_check
      _
    $region7: #{classify_layer_forward.1} parent=1 // pred_check_branch
      %26 = sbr.rel (0) target = $region9
    $region8: #{classify_layer_forward.1} parent=1 // pred_region
      %28 = vsyncadd [#allocation7], 0
      %s29 = sshll.u32 %s1, 4
      %s30 = int_to_ptr.hbm [resolvable:$true] %s29
      %s31 = sshll.u32 [#allocation6], 4
      %s32 = int_to_ptr.vmem [resolvable:$true] %s31
      %37 = dma.hbm_to_vmem [thread:$0]  %s30, 3072, %s32, [#allocation7], 768, 768, 48
    $region9: #{classify_layer_forward.1} parent=1 // pred_fallthru
      _
    // Predicated region
    $region10: #{classify_layer_forward.1} parent=1 // pred_check
      _
    $region11: #{classify_layer_forward.1} parent=1 // pred_check_branch
      %39 = sbr.rel (0) target = $region13
    $region12: #{classify_layer_forward.1} parent=1 // pred_region
      %41 = vsyncadd [#allocation7], 0
      %s43 = sshll.u32 %s2, 4
      %s44 = int_to_ptr.hbm [resolvable:$true] %s43
      %s45 = sshll.u32 [#allocation8], 4
      %s46 = int_to_ptr.vmem [resolvable:$true] %s45
      %48 = dma.hbm_to_vmem [thread:$0]  %s44, 96, %s46, [#allocation7]
    $region13: #{classify_layer_forward.1} parent=1 // pred_fallthru
      _
    // Predicated region
    $region14: #{classify_layer_forward.1} parent=1 // pred_check
      _
    $region15: #{classify_layer_forward.1} parent=1 // pred_check_branch
      %50 = sbr.rel (0) target = $region17
    $region16: #{classify_layer_forward.1} parent=1 // pred_region
      %52 = vsyncadd [#allocation10], 0
      %s53 = sshll.u32 %s3, 4
      %s54 = int_to_ptr.hbm [resolvable:$true] %s53
      %s55 = sshll.u32 [#allocation9], 4
      %s56 = int_to_ptr.vmem [resolvable:$true] %s55
      %61 = dma.hbm_to_vmem [thread:$0]  %s54, 12288, %s56, [#allocation10], 128, 128, 8
    $region17: #{classify_layer_forward.1} parent=1 // pred_fallthru
      _
    // Predicated region
    $region18: #{classify_layer_forward.1} parent=1 // pred_check
      _
    $region19: #{classify_layer_forward.1} parent=1 // pred_check_branch
      %63 = sbr.rel (0) target = $region21
    $region20: #{classify_layer_forward.1} parent=1 // pred_region
      _
    $region21: #{classify_layer_forward.1} parent=1 // pred_fallthru
      _
    // Predicated region
    $region22: #{classify_layer_forward.1} parent=1 // pred_check
      _
    $region23: #{classify_layer_forward.1} parent=1 // pred_check_branch
      %65 = sbr.rel (0) target = $region25
    $region24: #{classify_layer_forward.1} parent=1 // pred_region
      %67 = dma.done [#allocation4], 128
    $region25: #{classify_layer_forward.1} parent=1 // pred_fallthru
      _
    // Predicated region
    $region26: #{classify_layer_forward.1} parent=1 // pred_check
      _
    $region27: #{classify_layer_forward.1} parent=1 // pred_check_branch
      %69 = sbr.rel (0) target = $region29
    $region28: #{classify_layer_forward.1} parent=1 // pred_region
      %71 = dma.done [#allocation7], 3072
    $region29: #{classify_layer_forward.1} parent=1 // pred_fallthru
      _
    // Predicated region
    $region30: #{classify_layer_forward.1} parent=1 // pred_check
      _
    $region31: #{classify_layer_forward.1} parent=1 // pred_check_branch
      %73 = sbr.rel (0) target = $region33
    $region32: #{classify_layer_forward.1} parent=1 // pred_region
      %75 = dma.done [#allocation7], 96
    $region33: #{classify_layer_forward.1} parent=1 // pred_fallthru
      _
    // Predicated region
    $region34: #{classify_layer_forward.1} parent=1 // pred_check
      _
    $region35: #{classify_layer_forward.1} parent=1 // pred_check_branch
      %77 = sbr.rel (0) target = $region37
    $region36: #{classify_layer_forward.1} parent=1 // pred_region
      %79 = dma.done [#allocation10], 12288
    $region37: #{classify_layer_forward.1} parent=1 // pred_fallthru
      _
    %p80 = scmp.eq.s32.totalorder 0, 0
    // Predicated region
    $region38: #{classify_layer_forward.1} parent=1 // pred_check
      %p81 = pneg %p80
    $region39: #{classify_layer_forward.1} parent=1 // pred_check_branch
      %83 = sbr.rel (%p81) target = $region41
    $region40: #{classify_layer_forward.1} parent=1 // pred_region
      %84 = vst [vmem:[#allocation2] sm:$0xff] 0.0
      %85 = vst [vmem:[#allocation2 + $0x8] sm:$0xff] 0.0
      %86 = vst [vmem:[#allocation2 + $0x10] sm:$0xff] 0.0
      %87 = vst [vmem:[#allocation2 + $0x18] sm:$0xff] 0.0
      %88 = vst [vmem:[#allocation2 + $0x20] sm:$0xff] 0.0
      %89 = vst [vmem:[#allocation2 + $0x28] sm:$0xff] 0.0
    $region41: #{classify_layer_forward.1} parent=1 // pred_fallthru
      _
    %v90 = vld [vmem:[#allocation2] sm:$0xff]
    %v91 = vld [vmem:[#allocation2 + $0x8] sm:$0xff]
    %v92 = vld [vmem:[#allocation2 + $0x10] sm:$0xff]
    %v93 = vld [vmem:[#allocation2 + $0x18] sm:$0xff]
    %v94 = vld [vmem:[#allocation2 + $0x20] sm:$0xff]
    %v95 = vld [vmem:[#allocation2 + $0x28] sm:$0xff]
    %v96 = vld [vmem:[#allocation3] sm:$0xff]
    %v97 = vld [vmem:[#allocation6] sm:$0xff]
    %v98 = vld [vmem:[#allocation6 + $0x8] sm:$0xff]
    %v99 = vld [vmem:[#allocation6 + $0x10] sm:$0xff]
    %v100 = vld [vmem:[#allocation6 + $0x18] sm:$0xff]
    %v101 = vld [vmem:[#allocation6 + $0x20] sm:$0xff]
    %v102 = vld [vmem:[#allocation6 + $0x28] sm:$0xff]
    %v103 = vld [vmem:[#allocation6 + $0x30] sm:$0xff]
    %v104 = vld [vmem:[#allocation6 + $0x38] sm:$0xff]
    %v105 = vld [vmem:[#allocation6 + $0x40] sm:$0xff]
    %v106 = vld [vmem:[#allocation6 + $0x48] sm:$0xff]
    %v107 = vld [vmem:[#allocation6 + $0x50] sm:$0xff]
    %v108 = vld [vmem:[#allocation6 + $0x58] sm:$0xff]
    %v109 = vld [vmem:[#allocation6 + $0x60] sm:$0xff]
    %v110 = vld [vmem:[#allocation6 + $0x68] sm:$0xff]
    %v111 = vld [vmem:[#allocation6 + $0x70] sm:$0xff]
    %v112 = vld [vmem:[#allocation6 + $0x78] sm:$0xff]
    %v113 = vld [vmem:[#allocation6 + $0x80] sm:$0xff]
    %v114 = vld [vmem:[#allocation6 + $0x88] sm:$0xff]
    %v115 = vld [vmem:[#allocation6 + $0x90] sm:$0xff]
    %v116 = vld [vmem:[#allocation6 + $0x98] sm:$0xff]
    %v117 = vld [vmem:[#allocation6 + $0xa0] sm:$0xff]
    %v118 = vld [vmem:[#allocation6 + $0xa8] sm:$0xff]
    %v119 = vld [vmem:[#allocation6 + $0xb0] sm:$0xff]
    %v120 = vld [vmem:[#allocation6 + $0xb8] sm:$0xff]
    %vm121 = vcmask 261120
    %v123 = vsel %vm121, %v96, 0
    %125 = vmatpush.msra.mxu0 0.0
    %126 = vmatpush.msra.mxu0 0.0
    %127 = vmatpush.msra.mxu0 0.0
    %128 = vmatpush.msra.mxu0 0.0
    %129 = vmatpush.msra.mxu0 0.0
    %130 = vmatpush.msra.mxu0 0.0
    %131 = vmatpush.msra.mxu0 0.0
    %132 = vmatpush.msra.mxu0 0.0
    %133 = vmatpush.msra.mxu0 0.0
    %134 = vmatpush.msra.mxu0 0.0
    %135 = vmatpush.msra.mxu0 0.0
    %136 = vmatpush.msra.mxu0 0.0
    %137 = vmatpush.msra.mxu0 %v115
    %138 = vmatpush.msra.mxu0 %v109
    %139 = vmatpush.msra.mxu0 %v103
    %140 = vmatpush.msra.mxu0 %v97
    %141 = vmatmul.f32.gmra.mxu0 %v123
    %v142 = vpop.f32.mrf.mxu0
    %v143 = vadd.f32 0.0, %v142
    %144 = vdwg.mxu0
    %145 = vmatpush.msra.mxu0 0.0
    %146 = vmatpush.msra.mxu0 0.0
    %147 = vmatpush.msra.mxu0 0.0
    %148 = vmatpush.msra.mxu0 0.0
    %149 = vmatpush.msra.mxu0 0.0
    %150 = vmatpush.msra.mxu0 0.0
    %151 = vmatpush.msra.mxu0 0.0
    %152 = vmatpush.msra.mxu0 0.0
    %153 = vmatpush.msra.mxu0 0.0
    %154 = vmatpush.msra.mxu0 0.0
    %155 = vmatpush.msra.mxu0 0.0
    %156 = vmatpush.msra.mxu0 0.0
    %157 = vmatpush.msra.mxu0 %v116
    %158 = vmatpush.msra.mxu0 %v110
    %159 = vmatpush.msra.mxu0 %v104
    %160 = vmatpush.msra.mxu0 %v98
    %161 = vmatmul.f32.gmra.mxu0 %v123
    %v162 = vpop.f32.mrf.mxu0
    %v163 = vadd.f32 0.0, %v162
    %164 = vdwg.mxu0
    %165 = vmatpush.msra.mxu0 0.0
    %166 = vmatpush.msra.mxu0 0.0
    %167 = vmatpush.msra.mxu0 0.0
    %168 = vmatpush.msra.mxu0 0.0
    %169 = vmatpush.msra.mxu0 0.0
    %170 = vmatpush.msra.mxu0 0.0
    %171 = vmatpush.msra.mxu0 0.0
    %172 = vmatpush.msra.mxu0 0.0
    %173 = vmatpush.msra.mxu0 0.0
    %174 = vmatpush.msra.mxu0 0.0
    %175 = vmatpush.msra.mxu0 0.0
    %176 = vmatpush.msra.mxu0 0.0
    %177 = vmatpush.msra.mxu0 %v117
    %178 = vmatpush.msra.mxu0 %v111
    %179 = vmatpush.msra.mxu0 %v105
    %180 = vmatpush.msra.mxu0 %v99
    %181 = vmatmul.f32.gmra.mxu0 %v123
    %v182 = vpop.f32.mrf.mxu0
    %v183 = vadd.f32 0.0, %v182
    %184 = vdwg.mxu0
    %185 = vmatpush.msra.mxu0 0.0
    %186 = vmatpush.msra.mxu0 0.0
    %187 = vmatpush.msra.mxu0 0.0
    %188 = vmatpush.msra.mxu0 0.0
    %189 = vmatpush.msra.mxu0 0.0
    %190 = vmatpush.msra.mxu0 0.0
    %191 = vmatpush.msra.mxu0 0.0
    %192 = vmatpush.msra.mxu0 0.0
    %193 = vmatpush.msra.mxu0 0.0
    %194 = vmatpush.msra.mxu0 0.0
    %195 = vmatpush.msra.mxu0 0.0
    %196 = vmatpush.msra.mxu0 0.0
    %197 = vmatpush.msra.mxu0 %v118
    %198 = vmatpush.msra.mxu0 %v112
    %199 = vmatpush.msra.mxu0 %v106
    %200 = vmatpush.msra.mxu0 %v100
    %201 = vmatmul.f32.gmra.mxu0 %v123
    %v202 = vpop.f32.mrf.mxu0
    %v203 = vadd.f32 0.0, %v202
    %204 = vdwg.mxu0
    %205 = vmatpush.msra.mxu0 0.0
    %206 = vmatpush.msra.mxu0 0.0
    %207 = vmatpush.msra.mxu0 0.0
    %208 = vmatpush.msra.mxu0 0.0
    %209 = vmatpush.msra.mxu0 0.0
    %210 = vmatpush.msra.mxu0 0.0
    %211 = vmatpush.msra.mxu0 0.0
    %212 = vmatpush.msra.mxu0 0.0
    %213 = vmatpush.msra.mxu0 0.0
    %214 = vmatpush.msra.mxu0 0.0
    %215 = vmatpush.msra.mxu0 0.0
    %216 = vmatpush.msra.mxu0 0.0
    %217 = vmatpush.msra.mxu0 %v119
    %218 = vmatpush.msra.mxu0 %v113
    %219 = vmatpush.msra.mxu0 %v107
    %220 = vmatpush.msra.mxu0 %v101
    %221 = vmatmul.f32.gmra.mxu0 %v123
    %v222 = vpop.f32.mrf.mxu0
    %v223 = vadd.f32 0.0, %v222
    %224 = vdwg.mxu0
    %225 = vmatpush.msra.mxu0 0.0
    %226 = vmatpush.msra.mxu0 0.0
    %227 = vmatpush.msra.mxu0 0.0
    %228 = vmatpush.msra.mxu0 0.0
    %229 = vmatpush.msra.mxu0 0.0
    %230 = vmatpush.msra.mxu0 0.0
    %231 = vmatpush.msra.mxu0 0.0
    %232 = vmatpush.msra.mxu0 0.0
    %233 = vmatpush.msra.mxu0 0.0
    %234 = vmatpush.msra.mxu0 0.0
    %235 = vmatpush.msra.mxu0 0.0
    %236 = vmatpush.msra.mxu0 0.0
    %237 = vmatpush.msra.mxu0 %v120
    %238 = vmatpush.msra.mxu0 %v114
    %239 = vmatpush.msra.mxu0 %v108
    %240 = vmatpush.msra.mxu0 %v102
    %241 = vmatmul.f32.gmra.mxu0 %v123
    %v242 = vpop.f32.mrf.mxu0
    %v243 = vadd.f32 0.0, %v242
    %244 = vdwg.mxu0
    %v245 = vadd.f32 %v90, %v143
    %v246 = vadd.f32 %v91, %v163
    %v247 = vadd.f32 %v92, %v183
    %v248 = vadd.f32 %v93, %v203
    %v249 = vadd.f32 %v94, %v223
    %v250 = vadd.f32 %v95, %v243
    %251 = vst [vmem:[#allocation2] sm:$0xff] %v245
    %252 = vst [vmem:[#allocation2 + $0x8] sm:$0xff] %v246
    %253 = vst [vmem:[#allocation2 + $0x10] sm:$0xff] %v247
    %254 = vst [vmem:[#allocation2 + $0x18] sm:$0xff] %v248
    %255 = vst [vmem:[#allocation2 + $0x20] sm:$0xff] %v249
    %256 = vst [vmem:[#allocation2 + $0x28] sm:$0xff] %v250
    // Predicated region
    $region42: #{classify_layer_forward.1} parent=1 // pred_check
      %p257 = pneg %p80
    $region43: #{classify_layer_forward.1} parent=1 // pred_check_branch
      %259 = sbr.rel (%p257) target = $region45
    $region44: #{classify_layer_forward.1} parent=1 // pred_region
      %v260 = vld [vmem:[#allocation2] sm:$0xff]
      %v261 = vld [vmem:[#allocation2 + $0x8] sm:$0xff]
      %v262 = vld [vmem:[#allocation2 + $0x10] sm:$0xff]
      %v263 = vld [vmem:[#allocation2 + $0x18] sm:$0xff]
      %v264 = vld [vmem:[#allocation2 + $0x20] sm:$0xff]
      %v265 = vld [vmem:[#allocation2 + $0x28] sm:$0xff]
      %v266 = vld [vmem:[#allocation8] sm:$0x3f]
      %v268 = vperm.slane %v266, 0
      %v269 = vperm.slane %v266, 1
      %v270 = vperm.slane %v266, 2
      %v271 = vperm.slane %v266, 3
      %v272 = vperm.slane %v266, 4
      %v273 = vperm.slane %v266, 5
      %v280 = vadd.f32 %v260, %v268
      %v281 = vadd.f32 %v261, %v269
      %v282 = vadd.f32 %v262, %v270
      %v283 = vadd.f32 %v263, %v271
      %v284 = vadd.f32 %v264, %v272
      %v285 = vadd.f32 %v265, %v273
      %v286 = vmax.f32 %v280, 0.0
      %v287 = vmax.f32 %v281, 0.0
      %v288 = vmax.f32 %v282, 0.0
      %v289 = vmax.f32 %v283, 0.0
      %v290 = vmax.f32 %v284, 0.0
      %v291 = vmax.f32 %v285, 0.0
      %v292 = vld [vmem:[#allocation9] sm:$0xff]
      %v293 = vld [vmem:[#allocation9 + $0x8] sm:$0xff]
      %v294 = vld [vmem:[#allocation9 + $0x10] sm:$0xff]
      %v295 = vld [vmem:[#allocation9 + $0x18] sm:$0xff]
      %v296 = vld [vmem:[#allocation9 + $0x20] sm:$0xff]
      %v297 = vld [vmem:[#allocation9 + $0x28] sm:$0xff]
      %v298 = vld [vmem:[#allocation9 + $0x30] sm:$0xff]
      %v299 = vld [vmem:[#allocation9 + $0x38] sm:$0xff]
      %v300 = vld [vmem:[#allocation9 + $0x40] sm:$0xff]
      %v301 = vld [vmem:[#allocation9 + $0x48] sm:$0xff]
      %v302 = vld [vmem:[#allocation9 + $0x50] sm:$0xff]
      %v303 = vld [vmem:[#allocation9 + $0x58] sm:$0xff]
      %v304 = vld [vmem:[#allocation9 + $0x60] sm:$0xff]
      %v305 = vld [vmem:[#allocation9 + $0x68] sm:$0xff]
      %v306 = vld [vmem:[#allocation9 + $0x70] sm:$0xff]
      %v307 = vld [vmem:[#allocation9 + $0x78] sm:$0xff]
      %v308 = vld [vmem:[#allocation9 + $0x80] sm:$0xff]
      %v309 = vld [vmem:[#allocation9 + $0x88] sm:$0xff]
      %v310 = vld [vmem:[#allocation9 + $0x90] sm:$0xff]
      %v311 = vld [vmem:[#allocation9 + $0x98] sm:$0xff]
      %v312 = vld [vmem:[#allocation9 + $0xa0] sm:$0xff]
      %v313 = vld [vmem:[#allocation9 + $0xa8] sm:$0xff]
      %v314 = vld [vmem:[#allocation9 + $0xb0] sm:$0xff]
      %v315 = vld [vmem:[#allocation9 + $0xb8] sm:$0xff]
      %v316 = vld [vmem:[#allocation9 + $0xc0] sm:$0xff]
      %v317 = vld [vmem:[#allocation9 + $0xc8] sm:$0xff]
      %v318 = vld [vmem:[#allocation9 + $0xd0] sm:$0xff]
      %v319 = vld [vmem:[#allocation9 + $0xd8] sm:$0xff]
      %v320 = vld [vmem:[#allocation9 + $0xe0] sm:$0xff]
      %v321 = vld [vmem:[#allocation9 + $0xe8] sm:$0xff]
      %v322 = vld [vmem:[#allocation9 + $0xf0] sm:$0xff]
      %v323 = vld [vmem:[#allocation9 + $0xf8] sm:$0xff]
      %v324 = vld [vmem:[#allocation9 + $0x100] sm:$0xff]
      %v325 = vld [vmem:[#allocation9 + $0x108] sm:$0xff]
      %v326 = vld [vmem:[#allocation9 + $0x110] sm:$0xff]
      %v327 = vld [vmem:[#allocation9 + $0x118] sm:$0xff]
      %v328 = vld [vmem:[#allocation9 + $0x120] sm:$0xff]
      %v329 = vld [vmem:[#allocation9 + $0x128] sm:$0xff]
      %v330 = vld [vmem:[#allocation9 + $0x130] sm:$0xff]
      %v331 = vld [vmem:[#allocation9 + $0x138] sm:$0xff]
      %v332 = vld [vmem:[#allocation9 + $0x140] sm:$0xff]
      %v333 = vld [vmem:[#allocation9 + $0x148] sm:$0xff]
      %v334 = vld [vmem:[#allocation9 + $0x150] sm:$0xff]
      %v335 = vld [vmem:[#allocation9 + $0x158] sm:$0xff]
      %v336 = vld [vmem:[#allocation9 + $0x160] sm:$0xff]
      %v337 = vld [vmem:[#allocation9 + $0x168] sm:$0xff]
      %v338 = vld [vmem:[#allocation9 + $0x170] sm:$0xff]
      %v339 = vld [vmem:[#allocation9 + $0x178] sm:$0xff]
      %v340 = vld [vmem:[#allocation9 + $0x180] sm:$0xff]
      %v341 = vld [vmem:[#allocation9 + $0x188] sm:$0xff]
      %v342 = vld [vmem:[#allocation9 + $0x190] sm:$0xff]
      %v343 = vld [vmem:[#allocation9 + $0x198] sm:$0xff]
      %v344 = vld [vmem:[#allocation9 + $0x1a0] sm:$0xff]
      %v345 = vld [vmem:[#allocation9 + $0x1a8] sm:$0xff]
      %v346 = vld [vmem:[#allocation9 + $0x1b0] sm:$0xff]
      %v347 = vld [vmem:[#allocation9 + $0x1b8] sm:$0xff]
      %v348 = vld [vmem:[#allocation9 + $0x1c0] sm:$0xff]
      %v349 = vld [vmem:[#allocation9 + $0x1c8] sm:$0xff]
      %v350 = vld [vmem:[#allocation9 + $0x1d0] sm:$0xff]
      %v351 = vld [vmem:[#allocation9 + $0x1d8] sm:$0xff]
      %v352 = vld [vmem:[#allocation9 + $0x1e0] sm:$0xff]
      %v353 = vld [vmem:[#allocation9 + $0x1e8] sm:$0xff]
      %v354 = vld [vmem:[#allocation9 + $0x1f0] sm:$0xff]
      %v355 = vld [vmem:[#allocation9 + $0x1f8] sm:$0xff]
      %v356 = vld [vmem:[#allocation9 + $0x200] sm:$0xff]
      %v357 = vld [vmem:[#allocation9 + $0x208] sm:$0xff]
      %v358 = vld [vmem:[#allocation9 + $0x210] sm:$0xff]
      %v359 = vld [vmem:[#allocation9 + $0x218] sm:$0xff]
      %v360 = vld [vmem:[#allocation9 + $0x220] sm:$0xff]
      %v361 = vld [vmem:[#allocation9 + $0x228] sm:$0xff]
      %v362 = vld [vmem:[#allocation9 + $0x230] sm:$0xff]
      %v363 = vld [vmem:[#allocation9 + $0x238] sm:$0xff]
      %v364 = vld [vmem:[#allocation9 + $0x240] sm:$0xff]
      %v365 = vld [vmem:[#allocation9 + $0x248] sm:$0xff]
      %v366 = vld [vmem:[#allocation9 + $0x250] sm:$0xff]
      %v367 = vld [vmem:[#allocation9 + $0x258] sm:$0xff]
      %v368 = vld [vmem:[#allocation9 + $0x260] sm:$0xff]
      %v369 = vld [vmem:[#allocation9 + $0x268] sm:$0xff]
      %v370 = vld [vmem:[#allocation9 + $0x270] sm:$0xff]
      %v371 = vld [vmem:[#allocation9 + $0x278] sm:$0xff]
      %v372 = vld [vmem:[#allocation9 + $0x280] sm:$0xff]
      %v373 = vld [vmem:[#allocation9 + $0x288] sm:$0xff]
      %v374 = vld [vmem:[#allocation9 + $0x290] sm:$0xff]
      %v375 = vld [vmem:[#allocation9 + $0x298] sm:$0xff]
      %v376 = vld [vmem:[#allocation9 + $0x2a0] sm:$0xff]
      %v377 = vld [vmem:[#allocation9 + $0x2a8] sm:$0xff]
      %v378 = vld [vmem:[#allocation9 + $0x2b0] sm:$0xff]
      %v379 = vld [vmem:[#allocation9 + $0x2b8] sm:$0xff]
      %v380 = vld [vmem:[#allocation9 + $0x2c0] sm:$0xff]
      %v381 = vld [vmem:[#allocation9 + $0x2c8] sm:$0xff]
      %v382 = vld [vmem:[#allocation9 + $0x2d0] sm:$0xff]
      %v383 = vld [vmem:[#allocation9 + $0x2d8] sm:$0xff]
      %v384 = vld [vmem:[#allocation9 + $0x2e0] sm:$0xff]
      %v385 = vld [vmem:[#allocation9 + $0x2e8] sm:$0xff]
      %v386 = vld [vmem:[#allocation9 + $0x2f0] sm:$0xff]
      %v387 = vld [vmem:[#allocation9 + $0x2f8] sm:$0xff]
      %v388 = vld [vmem:[%s4] sm:$0x1]
      %v390 = vperm.slane %v388, 0
      %392 = vmatpush.msra.mxu0 %v307
      %393 = vmatpush.msra.mxu0 %v306
      %394 = vmatpush.msra.mxu0 %v305
      %395 = vmatpush.msra.mxu0 %v304
      %396 = vmatpush.msra.mxu0 %v303
      %397 = vmatpush.msra.mxu0 %v302
      %398 = vmatpush.msra.mxu0 %v301
      %399 = vmatpush.msra.mxu0 %v300
      %400 = vmatpush.msra.mxu0 %v299
      %401 = vmatpush.msra.mxu0 %v298
      %402 = vmatpush.msra.mxu0 %v297
      %403 = vmatpush.msra.mxu0 %v296
      %404 = vmatpush.msra.mxu0 %v295
      %405 = vmatpush.msra.mxu0 %v294
      %406 = vmatpush.msra.mxu0 %v293
      %407 = vmatpush.msra.mxu0 %v292
      %408 = vmatmul.f32.gmra.mxu0 %v286
      %v409 = vpop.f32.mrf.mxu0
      %v410 = vadd.f32 %v390, %v409
      %411 = vdwg.mxu0
      %412 = vmatpush.msra.mxu0 %v323
      %413 = vmatpush.msra.mxu0 %v322
      %414 = vmatpush.msra.mxu0 %v321
      %415 = vmatpush.msra.mxu0 %v320
      %416 = vmatpush.msra.mxu0 %v319
      %417 = vmatpush.msra.mxu0 %v318
      %418 = vmatpush.msra.mxu0 %v317
      %419 = vmatpush.msra.mxu0 %v316
      %420 = vmatpush.msra.mxu0 %v315
      %421 = vmatpush.msra.mxu0 %v314
      %422 = vmatpush.msra.mxu0 %v313
      %423 = vmatpush.msra.mxu0 %v312
      %424 = vmatpush.msra.mxu0 %v311
      %425 = vmatpush.msra.mxu0 %v310
      %426 = vmatpush.msra.mxu0 %v309
      %427 = vmatpush.msra.mxu0 %v308
      %428 = vmatmul.f32.gmra.mxu0 %v287
      %v429 = vpop.f32.mrf.mxu0
      %v430 = vadd.f32 %v410, %v429
      %431 = vdwg.mxu0
      %432 = vmatpush.msra.mxu0 %v339
      %433 = vmatpush.msra.mxu0 %v338
      %434 = vmatpush.msra.mxu0 %v337
      %435 = vmatpush.msra.mxu0 %v336
      %436 = vmatpush.msra.mxu0 %v335
      %437 = vmatpush.msra.mxu0 %v334
      %438 = vmatpush.msra.mxu0 %v333
      %439 = vmatpush.msra.mxu0 %v332
      %440 = vmatpush.msra.mxu0 %v331
      %441 = vmatpush.msra.mxu0 %v330
      %442 = vmatpush.msra.mxu0 %v329
      %443 = vmatpush.msra.mxu0 %v328
      %444 = vmatpush.msra.mxu0 %v327
      %445 = vmatpush.msra.mxu0 %v326
      %446 = vmatpush.msra.mxu0 %v325
      %447 = vmatpush.msra.mxu0 %v324
      %448 = vmatmul.f32.gmra.mxu0 %v288
      %v449 = vpop.f32.mrf.mxu0
      %v450 = vadd.f32 %v430, %v449
      %451 = vdwg.mxu0
      %452 = vmatpush.msra.mxu0 %v355
      %453 = vmatpush.msra.mxu0 %v354
      %454 = vmatpush.msra.mxu0 %v353
      %455 = vmatpush.msra.mxu0 %v352
      %456 = vmatpush.msra.mxu0 %v351
      %457 = vmatpush.msra.mxu0 %v350
      %458 = vmatpush.msra.mxu0 %v349
      %459 = vmatpush.msra.mxu0 %v348
      %460 = vmatpush.msra.mxu0 %v347
      %461 = vmatpush.msra.mxu0 %v346
      %462 = vmatpush.msra.mxu0 %v345
      %463 = vmatpush.msra.mxu0 %v344
      %464 = vmatpush.msra.mxu0 %v343
      %465 = vmatpush.msra.mxu0 %v342
      %466 = vmatpush.msra.mxu0 %v341
      %467 = vmatpush.msra.mxu0 %v340
      %468 = vmatmul.f32.gmra.mxu0 %v289
      %v469 = vpop.f32.mrf.mxu0
      %v470 = vadd.f32 %v450, %v469
      %471 = vdwg.mxu0
      %472 = vmatpush.msra.mxu0 %v371
      %473 = vmatpush.msra.mxu0 %v370
      %474 = vmatpush.msra.mxu0 %v369
      %475 = vmatpush.msra.mxu0 %v368
      %476 = vmatpush.msra.mxu0 %v367
      %477 = vmatpush.msra.mxu0 %v366
      %478 = vmatpush.msra.mxu0 %v365
      %479 = vmatpush.msra.mxu0 %v364
      %480 = vmatpush.msra.mxu0 %v363
      %481 = vmatpush.msra.mxu0 %v362
      %482 = vmatpush.msra.mxu0 %v361
      %483 = vmatpush.msra.mxu0 %v360
      %484 = vmatpush.msra.mxu0 %v359
      %485 = vmatpush.msra.mxu0 %v358
      %486 = vmatpush.msra.mxu0 %v357
      %487 = vmatpush.msra.mxu0 %v356
      %488 = vmatmul.f32.gmra.mxu0 %v290
      %v489 = vpop.f32.mrf.mxu0
      %v490 = vadd.f32 %v470, %v489
      %491 = vdwg.mxu0
      %492 = vmatpush.msra.mxu0 %v387
      %493 = vmatpush.msra.mxu0 %v386
      %494 = vmatpush.msra.mxu0 %v385
      %495 = vmatpush.msra.mxu0 %v384
      %496 = vmatpush.msra.mxu0 %v383
      %497 = vmatpush.msra.mxu0 %v382
      %498 = vmatpush.msra.mxu0 %v381
      %499 = vmatpush.msra.mxu0 %v380
      %500 = vmatpush.msra.mxu0 %v379
      %501 = vmatpush.msra.mxu0 %v378
      %502 = vmatpush.msra.mxu0 %v377
      %503 = vmatpush.msra.mxu0 %v376
      %504 = vmatpush.msra.mxu0 %v375
      %505 = vmatpush.msra.mxu0 %v374
      %506 = vmatpush.msra.mxu0 %v373
      %507 = vmatpush.msra.mxu0 %v372
      %508 = vmatmul.f32.gmra.mxu0 %v291
      %v509 = vpop.f32.mrf.mxu0
      %v510 = vadd.f32 %v490, %v509
      %511 = vdwg.mxu0
      %512 = vst [vmem:[#allocation11] sm:$0xff] %v510
    $region45: #{classify_layer_forward.1} parent=1 // pred_fallthru
      _
    // Predicated region
    $region46: #{classify_layer_forward.1} parent=1 // pred_check
      _
    $region47: #{classify_layer_forward.1} parent=1 // pred_check_branch
      %514 = sbr.rel (0) target = $region49
    $region48: #{classify_layer_forward.1} parent=1 // pred_region
      %516 = vsyncadd [#allocation5], 0
      %s518 = sshll.u32 [#allocation11], 4
      %s519 = int_to_ptr.vmem [resolvable:$true] %s518
      %s520 = sshll.u32 %s5, 4
      %s521 = int_to_ptr.hbm [resolvable:$true] %s520
      %523 = dma.vmem_to_hbm [thread:$0]  %s519, 128, %s521, [#allocation5]
    $region49: #{classify_layer_forward.1} parent=1 // pred_fallthru
      _
    // Predicated region
    $region50: #{classify_layer_forward.1} parent=1 // pred_check
      _
    $region51: #{classify_layer_forward.1} parent=1 // pred_check_branch
      %525 = sbr.rel (0) target = $region53
    $region52: #{classify_layer_forward.1} parent=1 // pred_region
      %527 = dma.done [#allocation5], 128
    $region53: #{classify_layer_forward.1} parent=1 // pred_fallthru
      _
    %528 = vsyncpa [#allocation4], 1
    %529 = vsyncpa [#allocation7], 1
    %530 = vsyncpa [#allocation10], 1
    %531 = vsyncpa [#allocation5], 1

</llo_original>
